<compile_context>
chip_gen: v5e
topology: v5e:2x2
jax: 0.10.0
libtpu: 0.0.40
codegen_flags: <defaults>
</compile_context>

<pallas_src>
import jax
import jax.numpy as jnp
from jax.experimental import pallas as pl
from jax.experimental.pallas import tpu as pltpu

BN_EPS = 1e-5

_CP_1D = pltpu.CompilerParams(dimension_semantics=("parallel",),
                              vmem_limit_bytes=32 * 1024 * 1024)
_CP_2D = pltpu.CompilerParams(dimension_semantics=("parallel", "parallel"),
                              vmem_limit_bytes=32 * 1024 * 1024)


# --------------------------- in-kernel conv helper ----------------------------
def _conv3x3_im2col(p, w_ref, pad_ref):
    """3x3 'same' conv of one spatial tile.

    p:       (Hp, Wp, C)   f32 activation tile
    w_ref:   (9*C, Co)     bf16 weights, rows ordered (ky, kx, cin)
    pad_ref: VMEM scratch  (Hp+2, Wp+2, C) f32 -- the 1-pixel zero halo lives here
             (no XLA-side jnp.pad, no extra HBM traffic)
    returns  (Hp*Wp, Co)   f32 (single MXU matmul: bf16 operands, f32 accumulate)
    """
    Hp, Wp, C = p.shape
    pad_ref[...] = jnp.zeros_like(pad_ref)
    pad_ref[1:Hp + 1, 1:Wp + 1, :] = p
    # im2col: the 9 shifted windows concatenated on the lane (channel) axis -> one matmul
    # with K = 9*C instead of 9 tiny dots + 8 full-tile VALU adds + 9 activation copies.
    cols = jnp.concatenate(
        [pad_ref[dy:dy + Hp, dx:dx + Wp, :] for dy in range(3) for dx in range(3)],
        axis=-1)                                             # (Hp, Wp, 9*C)
    cols = cols.reshape(Hp * Wp, 9 * C).astype(jnp.bfloat16)
    return jnp.dot(cols, w_ref[...], preferred_element_type=jnp.float32)


# ----------------------- K1: maxpool + conv1 + BN1 stats ----------------------
def _pool_conv_stats_kernel(x_ref, w_ref, y_ref, part_ref, rowmax_ref, pad_ref):
    H, W, _ = x_ref.shape
    Hp, Wp = H // 2, W // 2
    # fused 2x2 max-pool: strided loads straight from the VMEM tile, max on the VPU.
    rowmax_ref[...] = jnp.maximum(x_ref[pl.ds(0, Hp, stride=2)],     # rows 0,2,4,...
                                  x_ref[pl.ds(1, Hp, stride=2)])     # rows 1,3,5,...
    p = jnp.maximum(rowmax_ref[:, pl.ds(0, Wp, stride=2), :],        # cols 0,2,4,...
                    rowmax_ref[:, pl.ds(1, Wp, stride=2), :])        # cols 1,3,5,...

    y = _conv3x3_im2col(p.astype(jnp.float32), w_ref, pad_ref)       # (Hp*Wp, Cmid) f32

    # single-pass BN partial statistics (f32 sums; reduced globally outside the grid)
    part_ref[0:1, :] = jnp.sum(y, axis=0, keepdims=True)
    part_ref[1:2, :] = jnp.sum(y * y, axis=0, keepdims=True)
    y_ref[...] = y.reshape(Hp, Wp, -1).astype(y_ref.dtype)


# ------------------- K2: apply BN1+ReLU, conv2, BN2 stats ---------------------
def _bnrelu_conv_stats_kernel(y1_ref, sc_ref, sh_ref, w_ref, y_ref, part_ref, pad_ref):
    Hp, Wp, _ = y1_ref.shape
    # conv1's BatchNorm folded into a single fused multiply-add + ReLU, applied on the fly.
    t = y1_ref[...].astype(jnp.float32) * sc_ref[...] + sh_ref[...]
    t = jnp.maximum(t, 0.0)

    y = _conv3x3_im2col(t, w_ref, pad_ref)                           # (Hp*Wp, Cout) f32

    part_ref[0:1, :] = jnp.sum(y, axis=0, keepdims=True)
    part_ref[1:2, :] = jnp.sum(y * y, axis=0, keepdims=True)
    y_ref[...] = y.reshape(Hp, Wp, -1).astype(y_ref.dtype)


# -------------------------- K3: apply BN2 + ReLU ------------------------------
def _bnrelu_apply_kernel(y_ref, sc_ref, sh_ref, o_ref):
    t = y_ref[...].astype(jnp.float32) * sc_ref[...] + sh_ref[...]
    o_ref[...] = jnp.maximum(t, 0.0).astype(o_ref.dtype)


# ------------------------------ host-side glue --------------------------------
def _prep_weight(w_oihw):
    """PyTorch (Cout, Cin, 3, 3) -> (9*Cin, Cout) with rows ordered (ky, kx, cin), bf16."""
    co, ci, kh, kw = w_oihw.shape
    return jnp.transpose(w_oihw, (2, 3, 1, 0)).reshape(kh * kw * ci, co).astype(jnp.bfloat16)


def _bn_scale_shift(partials, gamma, beta, count):
    """Fold training-mode BatchNorm into per-channel scale/shift (tiny per-channel work)."""
    s = jnp.sum(partials[:, 0, :], axis=0)
    ss = jnp.sum(partials[:, 1, :], axis=0)
    mean = s / count
    var = jnp.maximum(ss / count - mean * mean, 0.0)        # E[x^2]-E[x]^2, f32 sums
    scale = gamma * jax.lax.rsqrt(var + BN_EPS)
    shift = beta - mean * scale
    return (scale.reshape(1, -1).astype(jnp.float32),
            shift.reshape(1, -1).astype(jnp.float32))


def _pool_conv1(x_nhwc, w_km):
    N, H, W, Cin = x_nhwc.shape
    Hp, Wp = H // 2, W // 2
    Cmid = w_km.shape[-1]
    return pl.pallas_call(
        _pool_conv_stats_kernel,
        grid=(N,),
        in_specs=[pl.BlockSpec((None, H, W, Cin), lambda n: (n, 0, 0, 0)),
                  pl.BlockSpec((9 * Cin, Cmid), lambda n: (0, 0))],
        out_specs=(pl.BlockSpec((None, Hp, Wp, Cmid), lambda n: (n, 0, 0, 0)),
                   pl.BlockSpec((None, 2, Cmid), lambda n: (n, 0, 0))),
        out_shape=(jax.ShapeDtypeStruct((N, Hp, Wp, Cmid), jnp.bfloat16),
                   jax.ShapeDtypeStruct((N, 2, Cmid), jnp.float32)),
        scratch_shapes=[pltpu.VMEM((Hp, W, Cin), jnp.float32),
                        pltpu.VMEM((Hp + 2, Wp + 2, Cin), jnp.float32)],
        compiler_params=_CP_1D,
    )(x_nhwc, w_km)


def _bnrelu_conv2(y1, scale1, shift1, w_km):
    N, Hp, Wp, Cmid = y1.shape
    Cout = w_km.shape[-1]
    return pl.pallas_call(
        _bnrelu_conv_stats_kernel,
        grid=(N,),
        in_specs=[pl.BlockSpec((None, Hp, Wp, Cmid), lambda n: (n, 0, 0, 0)),
                  pl.BlockSpec((1, Cmid), lambda n: (0, 0)),
                  pl.BlockSpec((1, Cmid), lambda n: (0, 0)),
                  pl.BlockSpec((9 * Cmid, Cout), lambda n: (0, 0))],
        out_specs=(pl.BlockSpec((None, Hp, Wp, Cout), lambda n: (n, 0, 0, 0)),
                   pl.BlockSpec((None, 2, Cout), lambda n: (n, 0, 0))),
        out_shape=(jax.ShapeDtypeStruct((N, Hp, Wp, Cout), jnp.bfloat16),
                   jax.ShapeDtypeStruct((N, 2, Cout), jnp.float32)),
        scratch_shapes=[pltpu.VMEM((Hp + 2, Wp + 2, Cmid), jnp.float32)],
        compiler_params=_CP_1D,
    )(y1, scale1, shift1, w_km)


def _row_tile(Hp):
    if Hp <= 64:
        return Hp
    for t in (64, 32, 16, 8, 4, 2):
        if Hp % t == 0:
            return t
    return 1


def _bnrelu_apply(y2, scale2, shift2, out_dtype):
    N, Hp, Wp, Cout = y2.shape
    th = _row_tile(Hp)
    return pl.pallas_call(
        _bnrelu_apply_kernel,
        grid=(N, Hp // th),
        in_specs=[pl.BlockSpec((None, th, Wp, Cout), lambda n, h: (n, h, 0, 0)),
                  pl.BlockSpec((1, Cout), lambda n, h: (0, 0)),
                  pl.BlockSpec((1, Cout), lambda n, h: (0, 0))],
        out_specs=pl.BlockSpec((None, th, Wp, Cout), lambda n, h: (n, h, 0, 0)),
        out_shape=jax.ShapeDtypeStruct((N, Hp, Wp, Cout), out_dtype),
        compiler_params=_CP_2D,
    )(y2, scale2, shift2)


# -------------------------------- Down module ---------------------------------
def down_forward_nhwc(x_nhwc, params1, params2):
    """Down.forward on NHWC input (native Pallas layout; no edge transposes)."""
    (w1, g1, b1), (w2, g2, b2) = params1, params2
    N, H, W, _ = x_nhwc.shape
    count = N * (H // 2) * (W // 2)                    # BN reduction size (N*Hp*Wp)
    y1, part1 = _pool_conv1(x_nhwc, _prep_weight(w1))
    sc1, sh1 = _bn_scale_shift(part1, g1, b1, count)
    y2, part2 = _bnrelu_conv2(y1, sc1, sh1, _prep_weight(w2))
    sc2, sh2 = _bn_scale_shift(part2, g2, b2, count)
    return _bnrelu_apply(y2, sc2, sh2, x_nhwc.dtype)


def down_forward(x_nchw, params1, params2):
    """PyTorch-parity wrapper (NCHW in / NCHW out). Prefer down_forward_nhwc when the
    surrounding model is already channels-last (avoids the two edge transposes)."""
    x = jnp.transpose(x_nchw, (0, 2, 3, 1))
    y = down_forward_nhwc(x, params1, params2)
    return jnp.transpose(y, (0, 3, 1, 2))


# ------------------------------ pure-JAX reference -----------------------------
def ref_down(x_nchw, p1, p2):
    x = jnp.transpose(x_nchw, (0, 2, 3, 1))
    N, H, W, C = x.shape
    x = x.reshape(N, H // 2, 2, W // 2, 2, C).max(axis=(2, 4))

    def cbr(x, w_oihw, gamma, beta):
        w = jnp.transpose(w_oihw, (2, 3, 1, 0))        # OIHW -> HWIO
        y = jax.lax.conv_general_dilated(
            x, w, window_strides=(1, 1), padding='SAME',
            dimension_numbers=('NHWC', 'HWIO', 'NHWC'))
        mean = y.mean(axis=(0, 1, 2))
        var = ((y - mean) ** 2).mean(axis=(0, 1, 2))
        y = (y - mean) / jnp.sqrt(var + BN_EPS) * gamma + beta
        return jnp.maximum(y, 0.0)

    x = cbr(x, *p1)
    x = cbr(x, *p2)
    return jnp.transpose(x, (0, 3, 1, 2))


if __name__ == "__main__":
    N, Cin, H, W = 2, 4, 16, 16
    Cout = 8
    Cmid = Cout                      # DoubleConv default: numMidChannels = numOutChannels

    key = jax.random.PRNGKey(0)
    ks = jax.random.split(key, 7)
    x = jax.random.normal(ks[0], (N, Cin, H, W), jnp.float32)

    # synthetic parameters in PyTorch shapes: conv weights (Cout, Cin, 3, 3), bias=False
    w1 = 0.2 * jax.random.normal(ks[1], (Cmid, Cin, 3, 3), jnp.float32)
    g1 = 1.0 + 0.1 * jax.random.normal(ks[2], (Cmid,), jnp.float32)
    b1 = 0.1 * jax.random.normal(ks[3], (Cmid,), jnp.float32)
    w2 = 0.2 * jax.random.normal(ks[4], (Cout, Cmid, 3, 3), jnp.float32)
    g2 = 1.0 + 0.1 * jax.random.normal(ks[5], (Cout,), jnp.float32)
    b2 = 0.1 * jax.random.normal(ks[6], (Cout,), jnp.float32)

    p1 = (w1, g1, b1)
    p2 = (w2, g2, b2)

    fwd = jax.jit(down_forward)
    out = jax.block_until_ready(fwd(x, p1, p2))
    assert out.shape == (N, Cout, H // 2, W // 2), out.shape

    # Tolerances account for the bf16 MXU operands (f32 accumulate / f32 BN); any logic bug
    # (tap order, weight layout, BN stats) produces O(0.1..1) errors and is still caught.
    ref = ref_down(x, p1, p2)
    err = jnp.abs(out - ref)
    max_err = float(jnp.max(err))
    mean_err = float(jnp.mean(err))
    assert max_err < 1e-1, ("max_err", max_err)
    assert mean_err < 2e-2, ("mean_err", mean_err)

    print("KERNEL_OK")
</pallas_src>

<mosaic_0001>
module attributes {stable_mosaic.version = 11 : i64} {
  func.func @_pool_conv_stats_kernel(%arg0: i32, %arg1: memref<1x16x16x4xf32, #tpu.memory_space<vmem>>, %arg2: memref<36x8xbf16, #tpu.memory_space<vmem>>, %arg3: memref<1x8x8x8xbf16, #tpu.memory_space<vmem>>, %arg4: memref<1x2x8xf32, #tpu.memory_space<vmem>>, %arg5: memref<8x16x4xf32, #tpu.memory_space<vmem>>, %arg6: memref<10x10x4xf32, #tpu.memory_space<vmem>>) attributes {dimension_semantics = [#tpu.dimension_semantics<parallel>], iteration_bounds = array<i64: 2>, scalar_prefetch = 0 : i64, scratch_operands = 2 : i64, tpu.core_type = #tpu.core_type<tc>, window_params = [{transform_indices = @transform_0, window_bounds = array<i64: 1, 16, 16, 4>}, {pipeline_mode = #tpu.pipeline_mode<synchronous>, transform_indices = @transform_1, window_bounds = array<i64: 36, 8>}, {transform_indices = @transform_2, window_bounds = array<i64: 1, 8, 8, 8>}, {transform_indices = @transform_3, window_bounds = array<i64: 1, 2, 8>}]} {
    %c0 = arith.constant 0 : index
    %c0_0 = arith.constant 0 : index
    %c0_1 = arith.constant 0 : index
    %c0_2 = arith.constant 0 : index
    %0 = tpu.strided_load %arg1[%c0, %c0_0, %c0_1, %c0_2] {strides = array<i32: 1, 2, 1, 1>} : memref<1x16x16x4xf32, #tpu.memory_space<vmem>>, vector<1x8x16x4xf32>
    %1 = vector.shape_cast %0 : vector<1x8x16x4xf32> to vector<8x16x4xf32>
    %c0_3 = arith.constant 0 : index
    %c1 = arith.constant 1 : index
    %c0_4 = arith.constant 0 : index
    %c0_5 = arith.constant 0 : index
    %2 = tpu.strided_load %arg1[%c0_3, %c1, %c0_4, %c0_5] {strides = array<i32: 1, 2, 1, 1>} : memref<1x16x16x4xf32, #tpu.memory_space<vmem>>, vector<1x8x16x4xf32>
    %3 = vector.shape_cast %2 : vector<1x8x16x4xf32> to vector<8x16x4xf32>
    %4 = arith.maximumf %1, %3 : vector<8x16x4xf32>
    %c0_6 = arith.constant 0 : index
    %c0_7 = arith.constant 0 : index
    %c0_8 = arith.constant 0 : index
    %5 = vector.load %arg5[%c0_6, %c0_7, %c0_8] : memref<8x16x4xf32, #tpu.memory_space<vmem>>, vector<8x16x4xf32>
    tpu.vector_store %arg5[%c0_6, %c0_7, %c0_8], %4 {strides = array<i32>} : memref<8x16x4xf32, #tpu.memory_space<vmem>>, vector<8x16x4xf32>,
    %c0_9 = arith.constant 0 : index
    %c0_10 = arith.constant 0 : index
    %c0_11 = arith.constant 0 : index
    %6 = tpu.strided_load %arg5[%c0_9, %c0_10, %c0_11] {strides = array<i32: 1, 2, 1>} : memref<8x16x4xf32, #tpu.memory_space<vmem>>, vector<8x8x4xf32>
    %c0_12 = arith.constant 0 : index
    %c1_13 = arith.constant 1 : index
    %c0_14 = arith.constant 0 : index
    %7 = tpu.strided_load %arg5[%c0_12, %c1_13, %c0_14] {strides = array<i32: 1, 2, 1>} : memref<8x16x4xf32, #tpu.memory_space<vmem>>, vector<8x8x4xf32>
    %8 = arith.maximumf %6, %7 : vector<8x8x4xf32>
    %cst = arith.constant 0.000000e+00 : f32
    %9 = vector.broadcast %cst : f32 to vector<10x10x4xf32>
    %c0_15 = arith.constant 0 : index
    %c0_16 = arith.constant 0 : index
    %c0_17 = arith.constant 0 : index
    %10 = vector.load %arg6[%c0_15, %c0_16, %c0_17] : memref<10x10x4xf32, #tpu.memory_space<vmem>>, vector<10x10x4xf32>
    tpu.vector_store %arg6[%c0_15, %c0_16, %c0_17], %9 {strides = array<i32>} : memref<10x10x4xf32, #tpu.memory_space<vmem>>, vector<10x10x4xf32>,
    %c1_18 = arith.constant 1 : index
    %c1_19 = arith.constant 1 : index
    %c0_20 = arith.constant 0 : index
    %11 = vector.load %arg6[%c1_18, %c1_19, %c0_20] : memref<10x10x4xf32, #tpu.memory_space<vmem>>, vector<8x8x4xf32>
    tpu.vector_store %arg6[%c1_18, %c1_19, %c0_20], %8 {strides = array<i32>} : memref<10x10x4xf32, #tpu.memory_space<vmem>>, vector<8x8x4xf32>,
    %c0_21 = arith.constant 0 : index
    %c0_22 = arith.constant 0 : index
    %c0_23 = arith.constant 0 : index
    %12 = vector.load %arg6[%c0_21, %c0_22, %c0_23] : memref<10x10x4xf32, #tpu.memory_space<vmem>>, vector<8x8x4xf32>
    %c0_24 = arith.constant 0 : index
    %c1_25 = arith.constant 1 : index
    %c0_26 = arith.constant 0 : index
    %13 = vector.load %arg6[%c0_24, %c1_25, %c0_26] : memref<10x10x4xf32, #tpu.memory_space<vmem>>, vector<8x8x4xf32>
    %c0_27 = arith.constant 0 : index
    %c2 = arith.constant 2 : index
    %c0_28 = arith.constant 0 : index
    %14 = vector.load %arg6[%c0_27, %c2, %c0_28] : memref<10x10x4xf32, #tpu.memory_space<vmem>>, vector<8x8x4xf32>
    %c1_29 = arith.constant 1 : index
    %c0_30 = arith.constant 0 : index
    %c0_31 = arith.constant 0 : index
    %15 = vector.load %arg6[%c1_29, %c0_30, %c0_31] : memref<10x10x4xf32, #tpu.memory_space<vmem>>, vector<8x8x4xf32>
    %c1_32 = arith.constant 1 : index
    %c1_33 = arith.constant 1 : index
    %c0_34 = arith.constant 0 : index
    %16 = vector.load %arg6[%c1_32, %c1_33, %c0_34] : memref<10x10x4xf32, #tpu.memory_space<vmem>>, vector<8x8x4xf32>
    %c1_35 = arith.constant 1 : index
    %c2_36 = arith.constant 2 : index
    %c0_37 = arith.constant 0 : index
    %17 = vector.load %arg6[%c1_35, %c2_36, %c0_37] : memref<10x10x4xf32, #tpu.memory_space<vmem>>, vector<8x8x4xf32>
    %c2_38 = arith.constant 2 : index
    %c0_39 = arith.constant 0 : index
    %c0_40 = arith.constant 0 : index
    %18 = vector.load %arg6[%c2_38, %c0_39, %c0_40] : memref<10x10x4xf32, #tpu.memory_space<vmem>>, vector<8x8x4xf32>
    %c2_41 = arith.constant 2 : index
    %c1_42 = arith.constant 1 : index
    %c0_43 = arith.constant 0 : index
    %19 = vector.load %arg6[%c2_41, %c1_42, %c0_43] : memref<10x10x4xf32, #tpu.memory_space<vmem>>, vector<8x8x4xf32>
    %c2_44 = arith.constant 2 : index
    %c2_45 = arith.constant 2 : index
    %c0_46 = arith.constant 0 : index
    %20 = vector.load %arg6[%c2_44, %c2_45, %c0_46] : memref<10x10x4xf32, #tpu.memory_space<vmem>>, vector<8x8x4xf32>
    %21 = tpu.concatenate %12, %13, %14, %15, %16, %17, %18, %19, %20 in 2 : vector<8x8x4xf32>, vector<8x8x4xf32>, vector<8x8x4xf32>, vector<8x8x4xf32>, vector<8x8x4xf32>, vector<8x8x4xf32>, vector<8x8x4xf32>, vector<8x8x4xf32>, vector<8x8x4xf32> -> vector<8x8x36xf32>
    %22 = vector.shape_cast %21 : vector<8x8x36xf32> to vector<64x36xf32>
    %23 = arith.truncf %22 : vector<64x36xf32> to vector<64x36xbf16>
    %c0_47 = arith.constant 0 : index
    %c0_48 = arith.constant 0 : index
    %24 = vector.load %arg2[%c0_47, %c0_48] : memref<36x8xbf16, #tpu.memory_space<vmem>>, vector<36x8xbf16>
    %cst_49 = arith.constant dense<0.000000e+00> : vector<64x8xf32>
    %25 = tpu.matmul %23, %24, %cst_49 {dimension_numbers = #tpu.dot_dimension_numbers<[1], [0], [0], [1], [0, 0, 1, 1], [], []>} : vector<64x36xbf16>, vector<36x8xbf16>, vector<64x8xf32> -> vector<64x8xf32>
    %cst_50 = arith.constant dense<0.000000e+00> : vector<8xf32>
    %26 = vector.multi_reduction <add>, %25, %cst_50 [0] : vector<64x8xf32> to vector<8xf32>
    %27 = vector.shape_cast %26 : vector<8xf32> to vector<1x8xf32>
    %c0_51 = arith.constant 0 : index
    %c0_52 = arith.constant 0 : index
    %c0_53 = arith.constant 0 : index
    %28 = vector.load %arg4[%c0_51, %c0_52, %c0_53] : memref<1x2x8xf32, #tpu.memory_space<vmem>>, vector<1x1x8xf32>
    %29 = vector.shape_cast %28 : vector<1x1x8xf32> to vector<1x8xf32>
    %30 = vector.shape_cast %27 : vector<1x8xf32> to vector<1x1x8xf32>
    tpu.vector_store %arg4[%c0_51, %c0_52, %c0_53], %30 {strides = array<i32>} : memref<1x2x8xf32, #tpu.memory_space<vmem>>, vector<1x1x8xf32>,
    %31 = arith.mulf %25, %25 : vector<64x8xf32>
    %cst_54 = arith.constant dense<0.000000e+00> : vector<8xf32>
    %32 = vector.multi_reduction <add>, %31, %cst_54 [0] : vector<64x8xf32> to vector<8xf32>
    %33 = vector.shape_cast %32 : vector<8xf32> to vector<1x8xf32>
    %c0_55 = arith.constant 0 : index
    %c1_56 = arith.constant 1 : index
    %c0_57 = arith.constant 0 : index
    %34 = vector.load %arg4[%c0_55, %c1_56, %c0_57] : memref<1x2x8xf32, #tpu.memory_space<vmem>>, vector<1x1x8xf32>
    %35 = vector.shape_cast %34 : vector<1x1x8xf32> to vector<1x8xf32>
    %36 = vector.shape_cast %33 : vector<1x8xf32> to vector<1x1x8xf32>
    tpu.vector_store %arg4[%c0_55, %c1_56, %c0_57], %36 {strides = array<i32>} : memref<1x2x8xf32, #tpu.memory_space<vmem>>, vector<1x1x8xf32>,
    %37 = vector.shape_cast %25 : vector<64x8xf32> to vector<8x8x8xf32>
    %38 = arith.truncf %37 : vector<8x8x8xf32> to vector<8x8x8xbf16>
    %c0_58 = arith.constant 0 : index
    %c0_59 = arith.constant 0 : index
    %c0_60 = arith.constant 0 : index
    %c0_61 = arith.constant 0 : index
    %39 = vector.load %arg3[%c0_58, %c0_59, %c0_60, %c0_61] : memref<1x8x8x8xbf16, #tpu.memory_space<vmem>>, vector<1x8x8x8xbf16>
    %40 = vector.shape_cast %39 : vector<1x8x8x8xbf16> to vector<8x8x8xbf16>
    %41 = vector.shape_cast %38 : vector<8x8x8xbf16> to vector<1x8x8x8xbf16>
    tpu.vector_store %arg3[%c0_58, %c0_59, %c0_60, %c0_61], %41 {strides = array<i32>} : memref<1x8x8x8xbf16, #tpu.memory_space<vmem>>, vector<1x8x8x8xbf16>,
    return
  }
  func.func @transform_0(%arg0: i32) -> (i32, i32, i32, i32) {
    %c0_i32 = arith.constant 0 : i32
    %c0_i32_0 = arith.constant 0 : i32
    %c0_i32_1 = arith.constant 0 : i32
    %c0_i32_2 = arith.constant 0 : i32
    return %arg0, %c0_i32, %c0_i32_0, %c0_i32_1 : i32, i32, i32, i32
  }
  func.func @transform_1(%arg0: i32) -> (i32, i32) {
    %c0_i32 = arith.constant 0 : i32
    %c0_i32_0 = arith.constant 0 : i32
    %c0_i32_1 = arith.constant 0 : i32
    return %c0_i32, %c0_i32_0 : i32, i32
  }
  func.func @transform_2(%arg0: i32) -> (i32, i32, i32, i32) {
    %c0_i32 = arith.constant 0 : i32
    %c0_i32_0 = arith.constant 0 : i32
    %c0_i32_1 = arith.constant 0 : i32
    %c0_i32_2 = arith.constant 0 : i32
    return %arg0, %c0_i32, %c0_i32_0, %c0_i32_1 : i32, i32, i32, i32
  }
  func.func @transform_3(%arg0: i32) -> (i32, i32, i32) {
    %c0_i32 = arith.constant 0 : i32
    %c0_i32_0 = arith.constant 0 : i32
    %c0_i32_1 = arith.constant 0 : i32
    return %arg0, %c0_i32, %c0_i32_0 : i32, i32, i32
  }
}

module attributes {stable_mosaic.version = 11 : i64} {
  func.func @_bnrelu_apply_kernel(%arg0: i32, %arg1: i32, %arg2: memref<1x8x8x8xbf16, #tpu.memory_space<vmem>>, %arg3: memref<1x8xf32, #tpu.memory_space<vmem>>, %arg4: memref<1x8xf32, #tpu.memory_space<vmem>>, %arg5: memref<1x8x8x8xf32, #tpu.memory_space<vmem>>) attributes {dimension_semantics = [#tpu.dimension_semantics<parallel>, #tpu.dimension_semantics<parallel>], iteration_bounds = array<i64: 2, 1>, scalar_prefetch = 0 : i64, scratch_operands = 0 : i64, tpu.core_type = #tpu.core_type<tc>, window_params = [{transform_indices = @transform_0, window_bounds = array<i64: 1, 8, 8, 8>}, {pipeline_mode = #tpu.pipeline_mode<synchronous>, transform_indices = @transform_1, window_bounds = array<i64: 1, 8>}, {pipeline_mode = #tpu.pipeline_mode<synchronous>, transform_indices = @transform_2, window_bounds = array<i64: 1, 8>}, {transform_indices = @transform_3, window_bounds = array<i64: 1, 8, 8, 8>}]} {
    %c0 = arith.constant 0 : index
    %c0_0 = arith.constant 0 : index
    %c0_1 = arith.constant 0 : index
    %c0_2 = arith.constant 0 : index
    %0 = vector.load %arg2[%c0, %c0_0, %c0_1, %c0_2] : memref<1x8x8x8xbf16, #tpu.memory_space<vmem>>, vector<1x8x8x8xbf16>
    %1 = vector.shape_cast %0 : vector<1x8x8x8xbf16> to vector<8x8x8xbf16>
    %2 = arith.extf %1 : vector<8x8x8xbf16> to vector<8x8x8xf32>
    %c0_3 = arith.constant 0 : index
    %c0_4 = arith.constant 0 : index
    %3 = vector.load %arg3[%c0_3, %c0_4] : memref<1x8xf32, #tpu.memory_space<vmem>>, vector<1x8xf32>
    %4 = vector.shape_cast %3 : vector<1x8xf32> to vector<1x1x8xf32>
    %5 = vector.broadcast %4 : vector<1x1x8xf32> to vector<8x8x8xf32>
    %6 = arith.mulf %2, %5 : vector<8x8x8xf32>
    %c0_5 = arith.constant 0 : index
    %c0_6 = arith.constant 0 : index
    %7 = vector.load %arg4[%c0_5, %c0_6] : memref<1x8xf32, #tpu.memory_space<vmem>>, vector<1x8xf32>
    %8 = vector.shape_cast %7 : vector<1x8xf32> to vector<1x1x8xf32>
    %9 = vector.broadcast %8 : vector<1x1x8xf32> to vector<8x8x8xf32>
    %10 = arith.addf %6, %9 : vector<8x8x8xf32>
    %cst = arith.constant 0.000000e+00 : f32
    %11 = vector.broadcast %cst : f32 to vector<8x8x8xf32>
    %12 = arith.maximumf %10, %11 : vector<8x8x8xf32>
    %c0_7 = arith.constant 0 : index
    %c0_8 = arith.constant 0 : index
    %c0_9 = arith.constant 0 : index
    %c0_10 = arith.constant 0 : index
    %13 = vector.load %arg5[%c0_7, %c0_8, %c0_9, %c0_10] : memref<1x8x8x8xf32, #tpu.memory_space<vmem>>, vector<1x8x8x8xf32>
    %14 = vector.shape_cast %13 : vector<1x8x8x8xf32> to vector<8x8x8xf32>
    %15 = vector.shape_cast %12 : vector<8x8x8xf32> to vector<1x8x8x8xf32>
    tpu.vector_store %arg5[%c0_7, %c0_8, %c0_9, %c0_10], %15 {strides = array<i32>} : memref<1x8x8x8xf32, #tpu.memory_space<vmem>>, vector<1x8x8x8xf32>,
    return
  }
  func.func @transform_0(%arg0: i32, %arg1: i32) -> (i32, i32, i32, i32) {
    %c0_i32 = arith.constant 0 : i32
    %c0_i32_0 = arith.constant 0 : i32
    %c0_i32_1 = arith.constant 0 : i32
    return %arg0, %arg1, %c0_i32, %c0_i32_0 : i32, i32, i32, i32
  }
  func.func @transform_1(%arg0: i32, %arg1: i32) -> (i32, i32) {
    %c0_i32 = arith.constant 0 : i32
    %c0_i32_0 = arith.constant 0 : i32
    %c0_i32_1 = arith.constant 0 : i32
    return %c0_i32, %c0_i32_0 : i32, i32
  }
  func.func @transform_2(%arg0: i32, %arg1: i32) -> (i32, i32) {
    %c0_i32 = arith.constant 0 : i32
    %c0_i32_0 = arith.constant 0 : i32
    %c0_i32_1 = arith.constant 0 : i32
    return %c0_i32, %c0_i32_0 : i32, i32
  }
  func.func @transform_3(%arg0: i32, %arg1: i32) -> (i32, i32, i32, i32) {
    %c0_i32 = arith.constant 0 : i32
    %c0_i32_0 = arith.constant 0 : i32
    %c0_i32_1 = arith.constant 0 : i32
    return %arg0, %arg1, %c0_i32, %c0_i32_0 : i32, i32, i32, i32
  }
}

module attributes {stable_mosaic.version = 11 : i64} {
  func.func @_bnrelu_conv_stats_kernel(%arg0: i32, %arg1: memref<1x8x8x8xbf16, #tpu.memory_space<vmem>>, %arg2: memref<1x8xf32, #tpu.memory_space<vmem>>, %arg3: memref<1x8xf32, #tpu.memory_space<vmem>>, %arg4: memref<72x8xbf16, #tpu.memory_space<vmem>>, %arg5: memref<1x8x8x8xbf16, #tpu.memory_space<vmem>>, %arg6: memref<1x2x8xf32, #tpu.memory_space<vmem>>, %arg7: memref<10x10x8xf32, #tpu.memory_space<vmem>>) attributes {dimension_semantics = [#tpu.dimension_semantics<parallel>], iteration_bounds = array<i64: 2>, scalar_prefetch = 0 : i64, scratch_operands = 1 : i64, tpu.core_type = #tpu.core_type<tc>, window_params = [{transform_indices = @transform_0, window_bounds = array<i64: 1, 8, 8, 8>}, {pipeline_mode = #tpu.pipeline_mode<synchronous>, transform_indices = @transform_1, window_bounds = array<i64: 1, 8>}, {pipeline_mode = #tpu.pipeline_mode<synchronous>, transform_indices = @transform_2, window_bounds = array<i64: 1, 8>}, {pipeline_mode = #tpu.pipeline_mode<synchronous>, transform_indices = @transform_3, window_bounds = array<i64: 72, 8>}, {transform_indices = @transform_4, window_bounds = array<i64: 1, 8, 8, 8>}, {transform_indices = @transform_5, window_bounds = array<i64: 1, 2, 8>}]} {
    %c0 = arith.constant 0 : index
    %c0_0 = arith.constant 0 : index
    %c0_1 = arith.constant 0 : index
    %c0_2 = arith.constant 0 : index
    %0 = vector.load %arg1[%c0, %c0_0, %c0_1, %c0_2] : memref<1x8x8x8xbf16, #tpu.memory_space<vmem>>, vector<1x8x8x8xbf16>
    %1 = vector.shape_cast %0 : vector<1x8x8x8xbf16> to vector<8x8x8xbf16>
    %2 = arith.extf %1 : vector<8x8x8xbf16> to vector<8x8x8xf32>
    %c0_3 = arith.constant 0 : index
    %c0_4 = arith.constant 0 : index
    %3 = vector.load %arg2[%c0_3, %c0_4] : memref<1x8xf32, #tpu.memory_space<vmem>>, vector<1x8xf32>
    %4 = vector.shape_cast %3 : vector<1x8xf32> to vector<1x1x8xf32>
    %5 = vector.broadcast %4 : vector<1x1x8xf32> to vector<8x8x8xf32>
    %6 = arith.mulf %2, %5 : vector<8x8x8xf32>
    %c0_5 = arith.constant 0 : index
    %c0_6 = arith.constant 0 : index
    %7 = vector.load %arg3[%c0_5, %c0_6] : memref<1x8xf32, #tpu.memory_space<vmem>>, vector<1x8xf32>
    %8 = vector.shape_cast %7 : vector<1x8xf32> to vector<1x1x8xf32>
    %9 = vector.broadcast %8 : vector<1x1x8xf32> to vector<8x8x8xf32>
    %10 = arith.addf %6, %9 : vector<8x8x8xf32>
    %cst = arith.constant 0.000000e+00 : f32
    %11 = vector.broadcast %cst : f32 to vector<8x8x8xf32>
    %12 = arith.maximumf %10, %11 : vector<8x8x8xf32>
    %cst_7 = arith.constant 0.000000e+00 : f32
    %13 = vector.broadcast %cst_7 : f32 to vector<10x10x8xf32>
    %c0_8 = arith.constant 0 : index
    %c0_9 = arith.constant 0 : index
    %c0_10 = arith.constant 0 : index
    %14 = vector.load %arg7[%c0_8, %c0_9, %c0_10] : memref<10x10x8xf32, #tpu.memory_space<vmem>>, vector<10x10x8xf32>
    tpu.vector_store %arg7[%c0_8, %c0_9, %c0_10], %13 {strides = array<i32>} : memref<10x10x8xf32, #tpu.memory_space<vmem>>, vector<10x10x8xf32>,
    %c1 = arith.constant 1 : index
    %c1_11 = arith.constant 1 : index
    %c0_12 = arith.constant 0 : index
    %15 = vector.load %arg7[%c1, %c1_11, %c0_12] : memref<10x10x8xf32, #tpu.memory_space<vmem>>, vector<8x8x8xf32>
    tpu.vector_store %arg7[%c1, %c1_11, %c0_12], %12 {strides = array<i32>} : memref<10x10x8xf32, #tpu.memory_space<vmem>>, vector<8x8x8xf32>,
    %c0_13 = arith.constant 0 : index
    %c0_14 = arith.constant 0 : index
    %c0_15 = arith.constant 0 : index
    %16 = vector.load %arg7[%c0_13, %c0_14, %c0_15] : memref<10x10x8xf32, #tpu.memory_space<vmem>>, vector<8x8x8xf32>
    %c0_16 = arith.constant 0 : index
    %c1_17 = arith.constant 1 : index
    %c0_18 = arith.constant 0 : index
    %17 = vector.load %arg7[%c0_16, %c1_17, %c0_18] : memref<10x10x8xf32, #tpu.memory_space<vmem>>, vector<8x8x8xf32>
    %c0_19 = arith.constant 0 : index
    %c2 = arith.constant 2 : index
    %c0_20 = arith.constant 0 : index
    %18 = vector.load %arg7[%c0_19, %c2, %c0_20] : memref<10x10x8xf32, #tpu.memory_space<vmem>>, vector<8x8x8xf32>
    %c1_21 = arith.constant 1 : index
    %c0_22 = arith.constant 0 : index
    %c0_23 = arith.constant 0 : index
    %19 = vector.load %arg7[%c1_21, %c0_22, %c0_23] : memref<10x10x8xf32, #tpu.memory_space<vmem>>, vector<8x8x8xf32>
    %c1_24 = arith.constant 1 : index
    %c1_25 = arith.constant 1 : index
    %c0_26 = arith.constant 0 : index
    %20 = vector.load %arg7[%c1_24, %c1_25, %c0_26] : memref<10x10x8xf32, #tpu.memory_space<vmem>>, vector<8x8x8xf32>
    %c1_27 = arith.constant 1 : index
    %c2_28 = arith.constant 2 : index
    %c0_29 = arith.constant 0 : index
    %21 = vector.load %arg7[%c1_27, %c2_28, %c0_29] : memref<10x10x8xf32, #tpu.memory_space<vmem>>, vector<8x8x8xf32>
    %c2_30 = arith.constant 2 : index
    %c0_31 = arith.constant 0 : index
    %c0_32 = arith.constant 0 : index
    %22 = vector.load %arg7[%c2_30, %c0_31, %c0_32] : memref<10x10x8xf32, #tpu.memory_space<vmem>>, vector<8x8x8xf32>
    %c2_33 = arith.constant 2 : index
    %c1_34 = arith.constant 1 : index
    %c0_35 = arith.constant 0 : index
    %23 = vector.load %arg7[%c2_33, %c1_34, %c0_35] : memref<10x10x8xf32, #tpu.memory_space<vmem>>, vector<8x8x8xf32>
    %c2_36 = arith.constant 2 : index
    %c2_37 = arith.constant 2 : index
    %c0_38 = arith.constant 0 : index
    %24 = vector.load %arg7[%c2_36, %c2_37, %c0_38] : memref<10x10x8xf32, #tpu.memory_space<vmem>>, vector<8x8x8xf32>
    %25 = tpu.concatenate %16, %17, %18, %19, %20, %21, %22, %23, %24 in 2 : vector<8x8x8xf32>, vector<8x8x8xf32>, vector<8x8x8xf32>, vector<8x8x8xf32>, vector<8x8x8xf32>, vector<8x8x8xf32>, vector<8x8x8xf32>, vector<8x8x8xf32>, vector<8x8x8xf32> -> vector<8x8x72xf32>
    %26 = vector.shape_cast %25 : vector<8x8x72xf32> to vector<64x72xf32>
    %27 = arith.truncf %26 : vector<64x72xf32> to vector<64x72xbf16>
    %c0_39 = arith.constant 0 : index
    %c0_40 = arith.constant 0 : index
    %28 = vector.load %arg4[%c0_39, %c0_40] : memref<72x8xbf16, #tpu.memory_space<vmem>>, vector<72x8xbf16>
    %cst_41 = arith.constant dense<0.000000e+00> : vector<64x8xf32>
    %29 = tpu.matmul %27, %28, %cst_41 {dimension_numbers = #tpu.dot_dimension_numbers<[1], [0], [0], [1], [0, 0, 1, 1], [], []>} : vector<64x72xbf16>, vector<72x8xbf16>, vector<64x8xf32> -> vector<64x8xf32>
    %cst_42 = arith.constant dense<0.000000e+00> : vector<8xf32>
    %30 = vector.multi_reduction <add>, %29, %cst_42 [0] : vector<64x8xf32> to vector<8xf32>
    %31 = vector.shape_cast %30 : vector<8xf32> to vector<1x8xf32>
    %c0_43 = arith.constant 0 : index
    %c0_44 = arith.constant 0 : index
    %c0_45 = arith.constant 0 : index
    %32 = vector.load %arg6[%c0_43, %c0_44, %c0_45] : memref<1x2x8xf32, #tpu.memory_space<vmem>>, vector<1x1x8xf32>
    %33 = vector.shape_cast %32 : vector<1x1x8xf32> to vector<1x8xf32>
    %34 = vector.shape_cast %31 : vector<1x8xf32> to vector<1x1x8xf32>
    tpu.vector_store %arg6[%c0_43, %c0_44, %c0_45], %34 {strides = array<i32>} : memref<1x2x8xf32, #tpu.memory_space<vmem>>, vector<1x1x8xf32>,
    %35 = arith.mulf %29, %29 : vector<64x8xf32>
    %cst_46 = arith.constant dense<0.000000e+00> : vector<8xf32>
    %36 = vector.multi_reduction <add>, %35, %cst_46 [0] : vector<64x8xf32> to vector<8xf32>
    %37 = vector.shape_cast %36 : vector<8xf32> to vector<1x8xf32>
    %c0_47 = arith.constant 0 : index
    %c1_48 = arith.constant 1 : index
    %c0_49 = arith.constant 0 : index
    %38 = vector.load %arg6[%c0_47, %c1_48, %c0_49] : memref<1x2x8xf32, #tpu.memory_space<vmem>>, vector<1x1x8xf32>
    %39 = vector.shape_cast %38 : vector<1x1x8xf32> to vector<1x8xf32>
    %40 = vector.shape_cast %37 : vector<1x8xf32> to vector<1x1x8xf32>
    tpu.vector_store %arg6[%c0_47, %c1_48, %c0_49], %40 {strides = array<i32>} : memref<1x2x8xf32, #tpu.memory_space<vmem>>, vector<1x1x8xf32>,
    %41 = vector.shape_cast %29 : vector<64x8xf32> to vector<8x8x8xf32>
    %42 = arith.truncf %41 : vector<8x8x8xf32> to vector<8x8x8xbf16>
    %c0_50 = arith.constant 0 : index
    %c0_51 = arith.constant 0 : index
    %c0_52 = arith.constant 0 : index
    %c0_53 = arith.constant 0 : index
    %43 = vector.load %arg5[%c0_50, %c0_51, %c0_52, %c0_53] : memref<1x8x8x8xbf16, #tpu.memory_space<vmem>>, vector<1x8x8x8xbf16>
    %44 = vector.shape_cast %43 : vector<1x8x8x8xbf16> to vector<8x8x8xbf16>
    %45 = vector.shape_cast %42 : vector<8x8x8xbf16> to vector<1x8x8x8xbf16>
    tpu.vector_store %arg5[%c0_50, %c0_51, %c0_52, %c0_53], %45 {strides = array<i32>} : memref<1x8x8x8xbf16, #tpu.memory_space<vmem>>, vector<1x8x8x8xbf16>,
    return
  }
  func.func @transform_0(%arg0: i32) -> (i32, i32, i32, i32) {
    %c0_i32 = arith.constant 0 : i32
    %c0_i32_0 = arith.constant 0 : i32
    %c0_i32_1 = arith.constant 0 : i32
    %c0_i32_2 = arith.constant 0 : i32
    return %arg0, %c0_i32, %c0_i32_0, %c0_i32_1 : i32, i32, i32, i32
  }
  func.func @transform_1(%arg0: i32) -> (i32, i32) {
    %c0_i32 = arith.constant 0 : i32
    %c0_i32_0 = arith.constant 0 : i32
    %c0_i32_1 = arith.constant 0 : i32
    return %c0_i32, %c0_i32_0 : i32, i32
  }
  func.func @transform_2(%arg0: i32) -> (i32, i32) {
    %c0_i32 = arith.constant 0 : i32
    %c0_i32_0 = arith.constant 0 : i32
    %c0_i32_1 = arith.constant 0 : i32
    return %c0_i32, %c0_i32_0 : i32, i32
  }
  func.func @transform_3(%arg0: i32) -> (i32, i32) {
    %c0_i32 = arith.constant 0 : i32
    %c0_i32_0 = arith.constant 0 : i32
    %c0_i32_1 = arith.constant 0 : i32
    return %c0_i32, %c0_i32_0 : i32, i32
  }
  func.func @transform_4(%arg0: i32) -> (i32, i32, i32, i32) {
    %c0_i32 = arith.constant 0 : i32
    %c0_i32_0 = arith.constant 0 : i32
    %c0_i32_1 = arith.constant 0 : i32
    %c0_i32_2 = arith.constant 0 : i32
    return %arg0, %c0_i32, %c0_i32_0, %c0_i32_1 : i32, i32, i32, i32
  }
  func.func @transform_5(%arg0: i32) -> (i32, i32, i32) {
    %c0_i32 = arith.constant 0 : i32
    %c0_i32_0 = arith.constant 0 : i32
    %c0_i32_1 = arith.constant 0 : i32
    return %arg0, %c0_i32, %c0_i32_0 : i32, i32, i32
  }
}

</mosaic_0001>

<llo_original>
// kernel: down_forward.5
$region0: #{down_forward.5}
  #allocation0 [shape = 'u32[]', space=smem, size = 0x4, offset = 0x4, fixed_abs, tag = 'smem constant byte address 0x4 - core index']
  #allocation1 [shape = 'u32[72,128]{1,0:T(1,128)}', space=vmem, size = 0x9000, scoped, tag = 'internal scratch']
  %s0 = inlined_call_operand.vmem [shape: bf16[2,8,8,8], index: 0, kind: input, shape index: {}]
  %s1 = inlined_call_operand.vmem [shape: f32[1,8], index: 1, kind: input, shape index: {}]
  %s2 = inlined_call_operand.vmem [shape: f32[1,8], index: 2, kind: input, shape index: {}]
  %s3 = inlined_call_operand.vmem [shape: f32[2,8,8,8], index: 3, kind: output, shape index: {}]
  %s4 = sld [smem:[#allocation0]]
  $region45: #{down_forward.5} parent=0
    _
  %s6 = ssub.s32 1, %s4
  %s7 = scalar_select 0, %s6, %s4
  loop: start=0, step=1, limit=4
  $region2: #{down_forward.5} parent=0 // loop_pre_header
    _
  $region3: #{down_forward.5} parent=0 // loop_header
    %s9 = sphi 0, %s13
    %p10 = scmp.ge.s32.totalorder %s9, 4
    %s16 = sphi 0, %s28
    %s17 = sphi 0, %s24
    %s18 = sphi 0, %s16
    %s19 = sphi 0, %s17
    %s20 = sphi 0, %s18
    %s21 = sphi 0, %s19
    %s33 = sphi 0, %s35
    %s36 = sphi 0, %s33
    %s37 = sphi 0, %s36
    %s53 = sphi 0, %s37
    %s57 = sphi 0, %s57
    %s59 = sphi 0, %s57
    %s60 = sphi 0, %s59
    %s74 = sphi 0, %s60
    %s78 = sphi 0, %s78
    %s80 = sphi 0, %s78
    %s81 = sphi 0, %s80
    %s95 = sphi 0, %s81
    %s103 = sphi 0, %s105
    %s106 = sphi 0, %s103
    %s107 = sphi 0, %s106
    %s123 = sphi 0, %s107
  $region4: #{down_forward.5} parent=0 // loop_header_branch
    %12 = sbr.rel (%p10) target = $region8
  $region5: #{down_forward.5} parent=0 // loop_body
    %s14 = ssub.s32 %s9, 1
    %s15 = ssub.s32 %s9, 2
    %s22 = sadd.s32 1, %s17
    %p23 = scmp.ge.s32.totalorder %s22, 1
    %s24 = scalar_select %p23, 0, %s22
    %s25 = sadd.s32 1, %s16
    %s26 = scalar_select %p23, %s25, %s16
    %p27 = scmp.ge.s32.totalorder %s26, 2
    %s28 = scalar_select %p27, 0, %s26
    %s29 = ssub.s32 %s16, %s28
    %s30 = ssub.s32 %s17, %s24
    %s31 = sor.u32 %s29, %s30
    %p32 = scmp.eq.s32.totalorder %s31, 0
    %s34 = sadd.s32 %s33, 1
    %s35 = scalar_select %p32, %s33, %s34
    %p38 = pneg %p32
    %p39 = scmp.eq.s32.totalorder %s9, 1
    %p40 = por %p38, %p39
    %p41 = scmp.ne.s32.totalorder %s33, %s36
    %p42 = scmp.eq.s32.totalorder %s9, 0
    %p43 = por %p41, %p42
    %p44 = scmp.ne.s32.totalorder %s33, %s36
    %p45 = scmp.eq.s32.totalorder %s14, 1
    %p46 = por %p44, %p45
    %p47 = scmp.ne.s32.totalorder %s36, %s37
    %p48 = scmp.eq.s32.totalorder %s14, 0
    %p49 = por %p47, %p48
    %p50 = scmp.ne.s32.totalorder %s36, %s37
    %p51 = scmp.eq.s32.totalorder %s15, 1
    %p52 = por %p50, %p51
    %p54 = scmp.ne.s32.totalorder %s37, %s53
    %p55 = scmp.eq.s32.totalorder %s15, 0
    %p56 = por %p54, %p55
    %s58 = sadd.s32 %s57, 1
    %p61 = scmp.eq.s32.totalorder %s9, 1
    %p62 = scmp.ne.s32.totalorder %s57, %s59
    %p63 = scmp.eq.s32.totalorder %s9, 0
    %p64 = por %p62, %p63
    %p65 = scmp.ne.s32.totalorder %s57, %s59
    %p66 = scmp.eq.s32.totalorder %s14, 1
    %p67 = por %p65, %p66
    %p68 = scmp.ne.s32.totalorder %s59, %s60
    %p69 = scmp.eq.s32.totalorder %s14, 0
    %p70 = por %p68, %p69
    %p71 = scmp.ne.s32.totalorder %s59, %s60
    %p72 = scmp.eq.s32.totalorder %s15, 1
    %p73 = por %p71, %p72
    %p75 = scmp.ne.s32.totalorder %s60, %s74
    %p76 = scmp.eq.s32.totalorder %s15, 0
    %p77 = por %p75, %p76
    %s79 = sadd.s32 %s78, 1
    %p82 = scmp.eq.s32.totalorder %s9, 1
    %p83 = scmp.ne.s32.totalorder %s78, %s80
    %p84 = scmp.eq.s32.totalorder %s9, 0
    %p85 = por %p83, %p84
    %p86 = scmp.ne.s32.totalorder %s78, %s80
    %p87 = scmp.eq.s32.totalorder %s14, 1
    %p88 = por %p86, %p87
    %p89 = scmp.ne.s32.totalorder %s80, %s81
    %p90 = scmp.eq.s32.totalorder %s14, 0
    %p91 = por %p89, %p90
    %p92 = scmp.ne.s32.totalorder %s80, %s81
    %p93 = scmp.eq.s32.totalorder %s15, 1
    %p94 = por %p92, %p93
    %p96 = scmp.ne.s32.totalorder %s81, %s95
    %p97 = scmp.eq.s32.totalorder %s15, 0
    %p98 = por %p96, %p97
    %s99 = ssub.s32 %s16, %s28
    %s100 = ssub.s32 %s17, %s24
    %s101 = sor.u32 %s99, %s100
    %p102 = scmp.eq.s32.totalorder %s101, 0
    %s104 = sadd.s32 %s103, 1
    %s105 = scalar_select %p102, %s103, %s104
    %p108 = pneg %p102
    %p109 = scmp.eq.s32.totalorder %s9, 1
    %p110 = por %p108, %p109
    %p111 = scmp.ne.s32.totalorder %s103, %s106
    %p112 = scmp.eq.s32.totalorder %s9, 0
    %p113 = por %p111, %p112
    %p114 = scmp.ne.s32.totalorder %s103, %s106
    %p115 = scmp.eq.s32.totalorder %s14, 1
    %p116 = por %p114, %p115
    %p117 = scmp.ne.s32.totalorder %s106, %s107
    %p118 = scmp.eq.s32.totalorder %s14, 0
    %p119 = por %p117, %p118
    %p120 = scmp.ne.s32.totalorder %s106, %s107
    %p121 = scmp.eq.s32.totalorder %s15, 1
    %p122 = por %p120, %p121
    %p124 = scmp.ne.s32.totalorder %s107, %s123
    %p125 = scmp.eq.s32.totalorder %s15, 0
    %p126 = por %p124, %p125
    %p127 = scmp.le.s32.totalorder 1, %s9
    %p128 = scmp.lt.s32.totalorder %s9, 3
    %p129 = pnand %p127, %p128
    %p130 = pneg %p129
    // Predicated region
    $region9: #{down_forward.5} parent=5 // pred_check
      _
    $region10: #{down_forward.5} parent=5 // pred_check_branch
      %132 = sbr.rel (%p129) target = $region12
    $region11: #{down_forward.5} parent=5 // pred_region
      %s133 = ssub.s32 %s9, 1
      // Predicated region
      $region13: #{down_forward.5} parent=11 // pred_check
        %p134 = pneg %p70
      $region14: #{down_forward.5} parent=11 // pred_check_branch
        %136 = sbr.rel (%p134) target = $region16
      $region15: #{down_forward.5} parent=11 // pred_region
        _
      $region16: #{down_forward.5} parent=11 // pred_fallthru
        _
      // Predicated region
      $region17: #{down_forward.5} parent=11 // pred_check
        %p137 = pneg %p91
      $region18: #{down_forward.5} parent=11 // pred_check_branch
        %139 = sbr.rel (%p137) target = $region20
      $region19: #{down_forward.5} parent=11 // pred_region
        _
      $region20: #{down_forward.5} parent=11 // pred_fallthru
        _
    $region12: #{down_forward.5} parent=5 // pred_fallthru
      _
    %p140 = scmp.lt.s32.totalorder %s9, 2
    // Predicated region
    $region21: #{down_forward.5} parent=5 // pred_check
      %p141 = pneg %p140
    $region22: #{down_forward.5} parent=5 // pred_check_branch
      %143 = sbr.rel (%p141) target = $region24
    $region23: #{down_forward.5} parent=5 // pred_region
      // Predicated region
      $region25: #{down_forward.5} parent=23 // pred_check
        %p144 = pneg %p43
      $region26: #{down_forward.5} parent=23 // pred_check_branch
        %146 = sbr.rel (%p144) target = $region28
      $region27: #{down_forward.5} parent=23 // pred_region
        %s147 = smul.u32 8, %s17
        %p148 = scmp.lt.s32.totalorder %s16, 1
        %s149 = scalar_select %p148, %s16, 1
        %p150 = scmp.lt.s32.totalorder %s147, 7
        %s151 = scalar_select %p150, %s147, 7
        %s152 = smul.addr %s149, 8
        %s153 = sadd.s32 %s151, %s152
        %s154 = smul.addr %s153, 4
        %s155 = scalar_lea.vmem %s0, %s154
        %s156 = smul.u32 8, %s17
      $region28: #{down_forward.5} parent=23 // pred_fallthru
        _
    $region24: #{down_forward.5} parent=5 // pred_fallthru
      _
    %p157 = scmp.le.s32.totalorder 1, %s9
    %p158 = scmp.lt.s32.totalorder %s9, 3
    %p159 = pnand %p157, %p158
    %p160 = pneg %p159
    // Predicated region
    $region29: #{down_forward.5} parent=5 // pred_check
      _
    $region30: #{down_forward.5} parent=5 // pred_check_branch
      %162 = sbr.rel (%p159) target = $region32
    $region31: #{down_forward.5} parent=5 // pred_region
      %s163 = ssub.s32 %s9, 1
      %s164 = smul.u32 8, %s19
      %p165 = scmp.lt.s32.totalorder %s18, 1
      %s166 = scalar_select %p165, %s18, 1
      %p167 = scmp.lt.s32.totalorder %s164, 7
      %s168 = scalar_select %p167, %s164, 7
      %s169 = smul.addr %s166, 8
      %s170 = sadd.s32 %s168, %s169
      %s171 = smul.addr %s170, 4
      %s172 = scalar_lea.vmem %s0, %s171
      %p173 = pneg %p49
      %p174 = pneg %p46
      %p175 = pneg %p70
      %p176 = pneg %p67
      %p177 = pneg %p91
      %p178 = pneg %p88
      %p179 = pneg %p119
      %p180 = pneg %p116
      %s181 = smul.u32 8, %s19
      %p182 = scmp.lt.s32.totalorder %s18, 1
      %s183 = scalar_select %p182, %s18, 1
      %p184 = scmp.lt.s32.totalorder %s181, 7
      %s185 = scalar_select %p184, %s181, 7
      %s186 = smul.addr %s183, 8
      %s187 = sadd.s32 %s185, %s186
      %s188 = smul.addr %s187, 8
      %s189 = scalar_lea.vmem %s3, %s188
      %s190 = smul.u32 8, %s19
      %p191 = scmp.lt.s32.totalorder %s18, 1
      %s192 = scalar_select %p191, %s18, 1
      %p193 = scmp.lt.s32.totalorder %s190, 7
      %s194 = scalar_select %p193, %s190, 7
      %s195 = smul.addr %s192, 8
      %s196 = sadd.s32 %s194, %s195
      %s197 = smul.addr %s196, 4
      %s198 = scalar_lea.vmem %s0, %s197
      %s199 = smul.u32 8, %s19
      %s200 = smul.u32 8, %s19
      %p201 = scmp.lt.s32.totalorder %s18, 1
      %s202 = scalar_select %p201, %s18, 1
      %p203 = scmp.lt.s32.totalorder %s200, 7
      %s204 = scalar_select %p203, %s200, 7
      %s205 = smul.addr %s202, 8
      %s206 = sadd.s32 %s204, %s205
      %s207 = smul.addr %s206, 8
      %s208 = scalar_lea.vmem %s3, %s207
      %s209 = smul.u32 8, %s19
      %v210 = vld [vmem:[%s198] sm:$0xf]
      %v211 = vld [vmem:[%s198 + $0x4] sm:$0xf]
      %v212 = vld [vmem:[%s198 + $0x8] sm:$0xf]
      %v213 = vld [vmem:[%s198 + $0xc] sm:$0xf]
      %v214 = vld [vmem:[%s198 + $0x10] sm:$0xf]
      %v215 = vld [vmem:[%s198 + $0x14] sm:$0xf]
      %v216 = vld [vmem:[%s198 + $0x18] sm:$0xf]
      %v217 = vld [vmem:[%s198 + $0x1c] sm:$0xf]
      %v218 = vunpack.c.l.bf16 %v210
      %v219 = vunpack.c.l.bf16 %v211
      %v220 = vunpack.c.l.bf16 %v212
      %v221 = vunpack.c.l.bf16 %v213
      %v222 = vunpack.c.l.bf16 %v214
      %v223 = vunpack.c.l.bf16 %v215
      %v224 = vunpack.c.l.bf16 %v216
      %v225 = vunpack.c.l.bf16 %v217
      %v226 = vld [vmem:[%s1] sm:$0x1]
      %v228 = vperm.slane %v226, 0
      %v230 = vmul.f32 %v218, %v228
      %v231 = vmul.f32 %v219, %v228
      %v232 = vmul.f32 %v220, %v228
      %v233 = vmul.f32 %v221, %v228
      %v234 = vmul.f32 %v222, %v228
      %v235 = vmul.f32 %v223, %v228
      %v236 = vmul.f32 %v224, %v228
      %v237 = vmul.f32 %v225, %v228
      %v238 = vld [vmem:[%s2] sm:$0x1]
      %v240 = vperm.slane %v238, 0
      %v242 = vadd.f32 %v230, %v240
      %v243 = vadd.f32 %v231, %v240
      %v244 = vadd.f32 %v232, %v240
      %v245 = vadd.f32 %v233, %v240
      %v246 = vadd.f32 %v234, %v240
      %v247 = vadd.f32 %v235, %v240
      %v248 = vadd.f32 %v236, %v240
      %v249 = vadd.f32 %v237, %v240
      %v250 = vmax.f32 %v242, 0.0
      %v251 = vmax.f32 %v243, 0.0
      %v252 = vmax.f32 %v244, 0.0
      %v253 = vmax.f32 %v245, 0.0
      %v254 = vmax.f32 %v246, 0.0
      %v255 = vmax.f32 %v247, 0.0
      %v256 = vmax.f32 %v248, 0.0
      %v257 = vmax.f32 %v249, 0.0
      %vm258 = vcmask 64512
      %259 = vst.msk [vmem:[%s208] sm:$0xff] %vm258, %v250
      %260 = vst.msk [vmem:[%s208 + $0x8] sm:$0xff] %vm258, %v251
      %261 = vst.msk [vmem:[%s208 + $0x10] sm:$0xff] %vm258, %v252
      %262 = vst.msk [vmem:[%s208 + $0x18] sm:$0xff] %vm258, %v253
      %263 = vst.msk [vmem:[%s208 + $0x20] sm:$0xff] %vm258, %v254
      %264 = vst.msk [vmem:[%s208 + $0x28] sm:$0xff] %vm258, %v255
      %265 = vst.msk [vmem:[%s208 + $0x30] sm:$0xff] %vm258, %v256
      %266 = vst.msk [vmem:[%s208 + $0x38] sm:$0xff] %vm258, %v257
      %s267 = smul.u32 8, %s19
      %p268 = scmp.lt.s32.totalorder %s18, 1
      %s269 = scalar_select %p268, %s18, 1
      %p270 = scmp.lt.s32.totalorder %s267, 7
      %s271 = scalar_select %p270, %s267, 7
      %s272 = smul.addr %s269, 8
      %s273 = sadd.s32 %s271, %s272
      %s274 = smul.addr %s273, 8
      %s275 = scalar_lea.vmem %s3, %s274
      // Predicated region
      $region33: #{down_forward.5} parent=31 // pred_check
        %p276 = pneg %p116
      $region34: #{down_forward.5} parent=31 // pred_check_branch
        %278 = sbr.rel (%p276) target = $region36
      $region35: #{down_forward.5} parent=31 // pred_region
        %s279 = smul.u32 8, %s19
      $region36: #{down_forward.5} parent=31 // pred_fallthru
        _
    $region32: #{down_forward.5} parent=5 // pred_fallthru
      _
    %p280 = scmp.le.s32.totalorder 2, %s9
    // Predicated region
    $region37: #{down_forward.5} parent=5 // pred_check
      %p281 = pneg %p280
    $region38: #{down_forward.5} parent=5 // pred_check_branch
      %283 = sbr.rel (%p281) target = $region40
    $region39: #{down_forward.5} parent=5 // pred_region
      %s284 = ssub.s32 %s9, 2
      // Predicated region
      $region41: #{down_forward.5} parent=39 // pred_check
        %p285 = pneg %p122
      $region42: #{down_forward.5} parent=39 // pred_check_branch
        %287 = sbr.rel (%p285) target = $region44
      $region43: #{down_forward.5} parent=39 // pred_region
        %s288 = smul.u32 8, %s21
        %p289 = scmp.lt.s32.totalorder %s20, 1
        %s290 = scalar_select %p289, %s20, 1
        %p291 = scmp.lt.s32.totalorder %s288, 7
        %s292 = scalar_select %p291, %s288, 7
        %s293 = smul.addr %s290, 8
        %s294 = sadd.s32 %s292, %s293
        %s295 = smul.addr %s294, 8
        %s296 = scalar_lea.vmem %s3, %s295
      $region44: #{down_forward.5} parent=39 // pred_fallthru
        _
    $region40: #{down_forward.5} parent=5 // pred_fallthru
      _
  $region6: #{down_forward.5} parent=0 // loop_footer
    %s13 = sadd.s32 1, %s9
  $region7: #{down_forward.5} parent=0 // loop_footer_branch
    %8 = sbr.rel target = $region3
  $region8: #{down_forward.5} parent=0 // loop_exit
    _

// kernel: down_forward.4
$region0: #{down_forward.4}
  #allocation0 [shape = 'u32[]', space=smem, size = 0x4, offset = 0x4, fixed_abs, tag = 'smem constant byte address 0x4 - core index']
  #allocation1 [shape = 'u32[72,128]{1,0:T(1,128)}', space=vmem, size = 0x9000, scoped, tag = 'internal scratch']
  #allocation2 [shape = 'f32[10,10,8]{2,1,0:T(8,128)}', space=vmem, size = 0x14000, scoped, tag = 'scratch operand']
  %s0 = inlined_call_operand.vmem [shape: bf16[2,8,8,8], index: 0, kind: input, shape index: {}]
  %s1 = inlined_call_operand.vmem [shape: f32[1,8], index: 1, kind: input, shape index: {}]
  %s2 = inlined_call_operand.vmem [shape: f32[1,8], index: 2, kind: input, shape index: {}]
  %s3 = inlined_call_operand.vmem [shape: bf16[72,8], index: 3, kind: input, shape index: {}]
  %s4 = inlined_call_operand.vmem [shape: bf16[2,8,8,8], index: 4, kind: output, shape index: {0}]
  %s5 = inlined_call_operand.vmem [shape: f32[2,2,8], index: 5, kind: output, shape index: {1}]
  %6 = xla_tuple %s4, %s5
  %s7 = sld [smem:[#allocation0]]
  $region57: #{down_forward.4} parent=0
    _
  %s9 = ssub.s32 1, %s7
  %s10 = scalar_select 0, %s9, %s7
  loop: start=0, step=1, limit=4
  $region2: #{down_forward.4} parent=0 // loop_pre_header
    _
  $region3: #{down_forward.4} parent=0 // loop_header
    %s12 = sphi 0, %s16
    %p13 = scmp.ge.s32.totalorder %s12, 4
    %s22 = sphi 0, %s24
    %s25 = sphi 0, %s22
    %s26 = sphi 0, %s25
    %s42 = sphi 0, %s26
    %s46 = sphi 0, %s46
    %s48 = sphi 0, %s46
    %s49 = sphi 0, %s48
    %s63 = sphi 0, %s49
    %s67 = sphi 0, %s67
    %s69 = sphi 0, %s67
    %s70 = sphi 0, %s69
    %s84 = sphi 0, %s70
    %s88 = sphi 0, %s88
    %s90 = sphi 0, %s88
    %s91 = sphi 0, %s90
    %s105 = sphi 0, %s91
    %s111 = sphi 0, %s113
    %s114 = sphi 0, %s111
    %s115 = sphi 0, %s114
    %s131 = sphi 0, %s115
    %s137 = sphi 0, %s139
    %s140 = sphi 0, %s137
    %s141 = sphi 0, %s140
    %s157 = sphi 0, %s141
  $region4: #{down_forward.4} parent=0 // loop_header_branch
    %15 = sbr.rel (%p13) target = $region8
  $region5: #{down_forward.4} parent=0 // loop_body
    %s17 = ssub.s32 %s12, 1
    %s18 = ssub.s32 %s12, 2
    %s19 = sadd.s32 %s12, 1
    %s20 = ssub.s32 %s12, %s19
    %p21 = scmp.eq.s32.totalorder %s20, 0
    %s23 = sadd.s32 %s22, 1
    %s24 = scalar_select %p21, %s22, %s23
    %p27 = pneg %p21
    %p28 = scmp.eq.s32.totalorder %s12, 1
    %p29 = por %p27, %p28
    %p30 = scmp.ne.s32.totalorder %s22, %s25
    %p31 = scmp.eq.s32.totalorder %s12, 0
    %p32 = por %p30, %p31
    %p33 = scmp.ne.s32.totalorder %s22, %s25
    %p34 = scmp.eq.s32.totalorder %s17, 1
    %p35 = por %p33, %p34
    %p36 = scmp.ne.s32.totalorder %s25, %s26
    %p37 = scmp.eq.s32.totalorder %s17, 0
    %p38 = por %p36, %p37
    %p39 = scmp.ne.s32.totalorder %s25, %s26
    %p40 = scmp.eq.s32.totalorder %s18, 1
    %p41 = por %p39, %p40
    %p43 = scmp.ne.s32.totalorder %s26, %s42
    %p44 = scmp.eq.s32.totalorder %s18, 0
    %p45 = por %p43, %p44
    %s47 = sadd.s32 %s46, 1
    %p50 = scmp.eq.s32.totalorder %s12, 1
    %p51 = scmp.ne.s32.totalorder %s46, %s48
    %p52 = scmp.eq.s32.totalorder %s12, 0
    %p53 = por %p51, %p52
    %p54 = scmp.ne.s32.totalorder %s46, %s48
    %p55 = scmp.eq.s32.totalorder %s17, 1
    %p56 = por %p54, %p55
    %p57 = scmp.ne.s32.totalorder %s48, %s49
    %p58 = scmp.eq.s32.totalorder %s17, 0
    %p59 = por %p57, %p58
    %p60 = scmp.ne.s32.totalorder %s48, %s49
    %p61 = scmp.eq.s32.totalorder %s18, 1
    %p62 = por %p60, %p61
    %p64 = scmp.ne.s32.totalorder %s49, %s63
    %p65 = scmp.eq.s32.totalorder %s18, 0
    %p66 = por %p64, %p65
    %s68 = sadd.s32 %s67, 1
    %p71 = scmp.eq.s32.totalorder %s12, 1
    %p72 = scmp.ne.s32.totalorder %s67, %s69
    %p73 = scmp.eq.s32.totalorder %s12, 0
    %p74 = por %p72, %p73
    %p75 = scmp.ne.s32.totalorder %s67, %s69
    %p76 = scmp.eq.s32.totalorder %s17, 1
    %p77 = por %p75, %p76
    %p78 = scmp.ne.s32.totalorder %s69, %s70
    %p79 = scmp.eq.s32.totalorder %s17, 0
    %p80 = por %p78, %p79
    %p81 = scmp.ne.s32.totalorder %s69, %s70
    %p82 = scmp.eq.s32.totalorder %s18, 1
    %p83 = por %p81, %p82
    %p85 = scmp.ne.s32.totalorder %s70, %s84
    %p86 = scmp.eq.s32.totalorder %s18, 0
    %p87 = por %p85, %p86
    %s89 = sadd.s32 %s88, 1
    %p92 = scmp.eq.s32.totalorder %s12, 1
    %p93 = scmp.ne.s32.totalorder %s88, %s90
    %p94 = scmp.eq.s32.totalorder %s12, 0
    %p95 = por %p93, %p94
    %p96 = scmp.ne.s32.totalorder %s88, %s90
    %p97 = scmp.eq.s32.totalorder %s17, 1
    %p98 = por %p96, %p97
    %p99 = scmp.ne.s32.totalorder %s90, %s91
    %p100 = scmp.eq.s32.totalorder %s17, 0
    %p101 = por %p99, %p100
    %p102 = scmp.ne.s32.totalorder %s90, %s91
    %p103 = scmp.eq.s32.totalorder %s18, 1
    %p104 = por %p102, %p103
    %p106 = scmp.ne.s32.totalorder %s91, %s105
    %p107 = scmp.eq.s32.totalorder %s18, 0
    %p108 = por %p106, %p107
    %s109 = ssub.s32 %s12, %s19
    %p110 = scmp.eq.s32.totalorder %s109, 0
    %s112 = sadd.s32 %s111, 1
    %s113 = scalar_select %p110, %s111, %s112
    %p116 = pneg %p110
    %p117 = scmp.eq.s32.totalorder %s12, 1
    %p118 = por %p116, %p117
    %p119 = scmp.ne.s32.totalorder %s111, %s114
    %p120 = scmp.eq.s32.totalorder %s12, 0
    %p121 = por %p119, %p120
    %p122 = scmp.ne.s32.totalorder %s111, %s114
    %p123 = scmp.eq.s32.totalorder %s17, 1
    %p124 = por %p122, %p123
    %p125 = scmp.ne.s32.totalorder %s114, %s115
    %p126 = scmp.eq.s32.totalorder %s17, 0
    %p127 = por %p125, %p126
    %p128 = scmp.ne.s32.totalorder %s114, %s115
    %p129 = scmp.eq.s32.totalorder %s18, 1
    %p130 = por %p128, %p129
    %p132 = scmp.ne.s32.totalorder %s115, %s131
    %p133 = scmp.eq.s32.totalorder %s18, 0
    %p134 = por %p132, %p133
    %s135 = ssub.s32 %s12, %s19
    %p136 = scmp.eq.s32.totalorder %s135, 0
    %s138 = sadd.s32 %s137, 1
    %s139 = scalar_select %p136, %s137, %s138
    %p142 = pneg %p136
    %p143 = scmp.eq.s32.totalorder %s12, 1
    %p144 = por %p142, %p143
    %p145 = scmp.ne.s32.totalorder %s137, %s140
    %p146 = scmp.eq.s32.totalorder %s12, 0
    %p147 = por %p145, %p146
    %p148 = scmp.ne.s32.totalorder %s137, %s140
    %p149 = scmp.eq.s32.totalorder %s17, 1
    %p150 = por %p148, %p149
    %p151 = scmp.ne.s32.totalorder %s140, %s141
    %p152 = scmp.eq.s32.totalorder %s17, 0
    %p153 = por %p151, %p152
    %p154 = scmp.ne.s32.totalorder %s140, %s141
    %p155 = scmp.eq.s32.totalorder %s18, 1
    %p156 = por %p154, %p155
    %p158 = scmp.ne.s32.totalorder %s141, %s157
    %p159 = scmp.eq.s32.totalorder %s18, 0
    %p160 = por %p158, %p159
    %p161 = scmp.le.s32.totalorder 1, %s12
    %p162 = scmp.lt.s32.totalorder %s12, 3
    %p163 = pnand %p161, %p162
    %p164 = pneg %p163
    // Predicated region
    $region9: #{down_forward.4} parent=5 // pred_check
      _
    $region10: #{down_forward.4} parent=5 // pred_check_branch
      %166 = sbr.rel (%p163) target = $region12
    $region11: #{down_forward.4} parent=5 // pred_region
      %s167 = ssub.s32 %s12, 1
      // Predicated region
      $region13: #{down_forward.4} parent=11 // pred_check
        %p168 = pneg %p59
      $region14: #{down_forward.4} parent=11 // pred_check_branch
        %170 = sbr.rel (%p168) target = $region16
      $region15: #{down_forward.4} parent=11 // pred_region
        _
      $region16: #{down_forward.4} parent=11 // pred_fallthru
        _
      // Predicated region
      $region17: #{down_forward.4} parent=11 // pred_check
        %p171 = pneg %p80
      $region18: #{down_forward.4} parent=11 // pred_check_branch
        %173 = sbr.rel (%p171) target = $region20
      $region19: #{down_forward.4} parent=11 // pred_region
        _
      $region20: #{down_forward.4} parent=11 // pred_fallthru
        _
      // Predicated region
      $region21: #{down_forward.4} parent=11 // pred_check
        %p174 = pneg %p101
      $region22: #{down_forward.4} parent=11 // pred_check_branch
        %176 = sbr.rel (%p174) target = $region24
      $region23: #{down_forward.4} parent=11 // pred_region
        _
      $region24: #{down_forward.4} parent=11 // pred_fallthru
        _
    $region12: #{down_forward.4} parent=5 // pred_fallthru
      _
    %p177 = scmp.lt.s32.totalorder %s12, 2
    // Predicated region
    $region25: #{down_forward.4} parent=5 // pred_check
      %p178 = pneg %p177
    $region26: #{down_forward.4} parent=5 // pred_check_branch
      %180 = sbr.rel (%p178) target = $region28
    $region27: #{down_forward.4} parent=5 // pred_region
      // Predicated region
      $region29: #{down_forward.4} parent=27 // pred_check
        %p181 = pneg %p32
      $region30: #{down_forward.4} parent=27 // pred_check_branch
        %183 = sbr.rel (%p181) target = $region32
      $region31: #{down_forward.4} parent=27 // pred_region
        %p184 = scmp.lt.s32.totalorder %s12, 1
        %s185 = scalar_select %p184, %s12, 1
        %s186 = smul.addr %s185, 8
        %s187 = smul.addr %s186, 4
        %s188 = scalar_lea.vmem %s0, %s187
      $region32: #{down_forward.4} parent=27 // pred_fallthru
        _
    $region28: #{down_forward.4} parent=5 // pred_fallthru
      _
    %p189 = scmp.le.s32.totalorder 1, %s12
    %p190 = scmp.lt.s32.totalorder %s12, 3
    %p191 = pnand %p189, %p190
    %p192 = pneg %p191
    // Predicated region
    $region33: #{down_forward.4} parent=5 // pred_check
      _
    $region34: #{down_forward.4} parent=5 // pred_check_branch
      %194 = sbr.rel (%p191) target = $region36
    $region35: #{down_forward.4} parent=5 // pred_region
      %s195 = ssub.s32 %s12, 1
      %p196 = scmp.lt.s32.totalorder %s17, 1
      %s197 = scalar_select %p196, %s17, 1
      %s198 = smul.addr %s197, 8
      %s199 = smul.addr %s198, 4
      %s200 = scalar_lea.vmem %s0, %s199
      %p201 = pneg %p38
      %p202 = pneg %p35
      %p203 = pneg %p59
      %p204 = pneg %p56
      %p205 = pneg %p80
      %p206 = pneg %p77
      %p207 = pneg %p101
      %p208 = pneg %p98
      %p209 = pneg %p127
      %p210 = pneg %p124
      %p211 = scmp.lt.s32.totalorder %s17, 1
      %s212 = scalar_select %p211, %s17, 1
      %s213 = smul.addr %s212, 8
      %s214 = smul.addr %s213, 4
      %s215 = scalar_lea.vmem %s4, %s214
      %p216 = pneg %p153
      %p217 = pneg %p150
      %p218 = scmp.lt.s32.totalorder %s17, 1
      %s219 = scalar_select %p218, %s17, 1
      %s220 = smul.addr %s219, 2
      %s221 = scalar_lea.vmem %s5, %s220
      %p222 = scmp.lt.s32.totalorder %s17, 1
      %s223 = scalar_select %p222, %s17, 1
      %s224 = smul.addr %s223, 8
      %s225 = smul.addr %s224, 4
      %s226 = scalar_lea.vmem %s0, %s225
      %p227 = scmp.lt.s32.totalorder %s17, 1
      %s228 = scalar_select %p227, %s17, 1
      %s229 = smul.addr %s228, 8
      %s230 = smul.addr %s229, 4
      %s231 = scalar_lea.vmem %s4, %s230
      %p232 = scmp.lt.s32.totalorder %s17, 1
      %s233 = scalar_select %p232, %s17, 1
      %s234 = smul.addr %s233, 2
      %s235 = scalar_lea.vmem %s5, %s234
      %v237 = vld [vmem:[%s226] sm:$0xf]
      %v238 = vld [vmem:[%s226 + $0x4] sm:$0xf]
      %v239 = vld [vmem:[%s226 + $0x8] sm:$0xf]
      %v240 = vld [vmem:[%s226 + $0xc] sm:$0xf]
      %v241 = vld [vmem:[%s226 + $0x10] sm:$0xf]
      %v242 = vld [vmem:[%s226 + $0x14] sm:$0xf]
      %v243 = vld [vmem:[%s226 + $0x18] sm:$0xf]
      %v244 = vld [vmem:[%s226 + $0x1c] sm:$0xf]
      %v245 = vunpack.c.l.bf16 %v237
      %v246 = vunpack.c.l.bf16 %v238
      %v247 = vunpack.c.l.bf16 %v239
      %v248 = vunpack.c.l.bf16 %v240
      %v249 = vunpack.c.l.bf16 %v241
      %v250 = vunpack.c.l.bf16 %v242
      %v251 = vunpack.c.l.bf16 %v243
      %v252 = vunpack.c.l.bf16 %v244
      %v253 = vld [vmem:[%s1] sm:$0x1]
      %v255 = vperm.slane %v253, 0
      %v257 = vmul.f32 %v245, %v255
      %v258 = vmul.f32 %v246, %v255
      %v259 = vmul.f32 %v247, %v255
      %v260 = vmul.f32 %v248, %v255
      %v261 = vmul.f32 %v249, %v255
      %v262 = vmul.f32 %v250, %v255
      %v263 = vmul.f32 %v251, %v255
      %v264 = vmul.f32 %v252, %v255
      %v265 = vld [vmem:[%s2] sm:$0x1]
      %v267 = vperm.slane %v265, 0
      %v269 = vadd.f32 %v257, %v267
      %v270 = vadd.f32 %v258, %v267
      %v271 = vadd.f32 %v259, %v267
      %v272 = vadd.f32 %v260, %v267
      %v273 = vadd.f32 %v261, %v267
      %v274 = vadd.f32 %v262, %v267
      %v275 = vadd.f32 %v263, %v267
      %v276 = vadd.f32 %v264, %v267
      %v277 = vmax.f32 %v269, 0.0
      %v278 = vmax.f32 %v270, 0.0
      %v279 = vmax.f32 %v271, 0.0
      %v280 = vmax.f32 %v272, 0.0
      %v281 = vmax.f32 %v273, 0.0
      %v282 = vmax.f32 %v274, 0.0
      %v283 = vmax.f32 %v275, 0.0
      %v284 = vmax.f32 %v276, 0.0
      %vm285 = vcmask 64512
      %286 = vst.msk [vmem:[#allocation2] sm:$0xff] %vm285, 0.0
      %vm287 = vcmask 58368
      %288 = vst.msk [vmem:[#allocation2 + $0x8] sm:$0x3] %vm287, 0.0
      %289 = vst.msk [vmem:[#allocation2 + $0x10] sm:$0xff] %vm285, 0.0
      %290 = vst.msk [vmem:[#allocation2 + $0x18] sm:$0x3] %vm287, 0.0
      %291 = vst.msk [vmem:[#allocation2 + $0x20] sm:$0xff] %vm285, 0.0
      %292 = vst.msk [vmem:[#allocation2 + $0x28] sm:$0x3] %vm287, 0.0
      %293 = vst.msk [vmem:[#allocation2 + $0x30] sm:$0xff] %vm285, 0.0
      %294 = vst.msk [vmem:[#allocation2 + $0x38] sm:$0x3] %vm287, 0.0
      %295 = vst.msk [vmem:[#allocation2 + $0x40] sm:$0xff] %vm285, 0.0
      %296 = vst.msk [vmem:[#allocation2 + $0x48] sm:$0x3] %vm287, 0.0
      %297 = vst.msk [vmem:[#allocation2 + $0x50] sm:$0xff] %vm285, 0.0
      %298 = vst.msk [vmem:[#allocation2 + $0x58] sm:$0x3] %vm287, 0.0
      %299 = vst.msk [vmem:[#allocation2 + $0x60] sm:$0xff] %vm285, 0.0
      %300 = vst.msk [vmem:[#allocation2 + $0x68] sm:$0x3] %vm287, 0.0
      %301 = vst.msk [vmem:[#allocation2 + $0x70] sm:$0xff] %vm285, 0.0
      %302 = vst.msk [vmem:[#allocation2 + $0x78] sm:$0x3] %vm287, 0.0
      %303 = vst.msk [vmem:[#allocation2 + $0x80] sm:$0xff] %vm285, 0.0
      %304 = vst.msk [vmem:[#allocation2 + $0x88] sm:$0x3] %vm287, 0.0
      %305 = vst.msk [vmem:[#allocation2 + $0x90] sm:$0xff] %vm285, 0.0
      %306 = vst.msk [vmem:[#allocation2 + $0x98] sm:$0x3] %vm287, 0.0
      %s307 = scalar_lea.vmem [#allocation2], 16
      %308 = vst.msk [vmem:[%s307 + $0x1] sm:$0xff] %vm285, %v277
      %309 = vst.msk [vmem:[%s307 + $0x11] sm:$0xff] %vm285, %v278
      %310 = vst.msk [vmem:[%s307 + $0x21] sm:$0xff] %vm285, %v279
      %311 = vst.msk [vmem:[%s307 + $0x31] sm:$0xff] %vm285, %v280
      %312 = vst.msk [vmem:[%s307 + $0x41] sm:$0xff] %vm285, %v281
      %313 = vst.msk [vmem:[%s307 + $0x51] sm:$0xff] %vm285, %v282
      %314 = vst.msk [vmem:[%s307 + $0x61] sm:$0xff] %vm285, %v283
      %315 = vst.msk [vmem:[%s307 + $0x71] sm:$0xff] %vm285, %v284
      %v316 = vld [vmem:[#allocation2] sm:$0xff]
      %v317 = vld [vmem:[#allocation2 + $0x10] sm:$0xff]
      %v318 = vld [vmem:[#allocation2 + $0x20] sm:$0xff]
      %v319 = vld [vmem:[#allocation2 + $0x30] sm:$0xff]
      %v320 = vld [vmem:[#allocation2 + $0x40] sm:$0xff]
      %v321 = vld [vmem:[#allocation2 + $0x50] sm:$0xff]
      %v322 = vld [vmem:[#allocation2 + $0x60] sm:$0xff]
      %v323 = vld [vmem:[#allocation2 + $0x70] sm:$0xff]
      %v324 = vld [vmem:[#allocation2 + $0x1] sm:$0xff]
      %v325 = vld [vmem:[#allocation2 + $0x11] sm:$0xff]
      %v326 = vld [vmem:[#allocation2 + $0x21] sm:$0xff]
      %v327 = vld [vmem:[#allocation2 + $0x31] sm:$0xff]
      %v328 = vld [vmem:[#allocation2 + $0x41] sm:$0xff]
      %v329 = vld [vmem:[#allocation2 + $0x51] sm:$0xff]
      %v330 = vld [vmem:[#allocation2 + $0x61] sm:$0xff]
      %v331 = vld [vmem:[#allocation2 + $0x71] sm:$0xff]
      %v332 = vld [vmem:[#allocation2 + $0x2] sm:$0xff]
      %v333 = vld [vmem:[#allocation2 + $0x12] sm:$0xff]
      %v334 = vld [vmem:[#allocation2 + $0x22] sm:$0xff]
      %v335 = vld [vmem:[#allocation2 + $0x32] sm:$0xff]
      %v336 = vld [vmem:[#allocation2 + $0x42] sm:$0xff]
      %v337 = vld [vmem:[#allocation2 + $0x52] sm:$0xff]
      %v338 = vld [vmem:[#allocation2 + $0x62] sm:$0xff]
      %v339 = vld [vmem:[#allocation2 + $0x72] sm:$0xff]
      %v340 = vld [vmem:[%s307] sm:$0xff]
      %v341 = vld [vmem:[%s307 + $0x10] sm:$0xff]
      %v342 = vld [vmem:[%s307 + $0x20] sm:$0xff]
      %v343 = vld [vmem:[%s307 + $0x30] sm:$0xff]
      %v344 = vld [vmem:[%s307 + $0x40] sm:$0xff]
      %v345 = vld [vmem:[%s307 + $0x50] sm:$0xff]
      %v346 = vld [vmem:[%s307 + $0x60] sm:$0xff]
      %v347 = vld [vmem:[%s307 + $0x70] sm:$0xff]
      %v348 = vld [vmem:[%s307 + $0x1] sm:$0xff]
      %v349 = vld [vmem:[%s307 + $0x11] sm:$0xff]
      %v350 = vld [vmem:[%s307 + $0x21] sm:$0xff]
      %v351 = vld [vmem:[%s307 + $0x31] sm:$0xff]
      %v352 = vld [vmem:[%s307 + $0x41] sm:$0xff]
      %v353 = vld [vmem:[%s307 + $0x51] sm:$0xff]
      %v354 = vld [vmem:[%s307 + $0x61] sm:$0xff]
      %v355 = vld [vmem:[%s307 + $0x71] sm:$0xff]
      %v356 = vld [vmem:[%s307 + $0x2] sm:$0xff]
      %v357 = vld [vmem:[%s307 + $0x12] sm:$0xff]
      %v358 = vld [vmem:[%s307 + $0x22] sm:$0xff]
      %v359 = vld [vmem:[%s307 + $0x32] sm:$0xff]
      %v360 = vld [vmem:[%s307 + $0x42] sm:$0xff]
      %v361 = vld [vmem:[%s307 + $0x52] sm:$0xff]
      %v362 = vld [vmem:[%s307 + $0x62] sm:$0xff]
      %v363 = vld [vmem:[%s307 + $0x72] sm:$0xff]
      %s364 = scalar_lea.vmem [#allocation2], 32
      %v365 = vld [vmem:[%s364] sm:$0xff]
      %v366 = vld [vmem:[%s364 + $0x10] sm:$0xff]
      %v367 = vld [vmem:[%s364 + $0x20] sm:$0xff]
      %v368 = vld [vmem:[%s364 + $0x30] sm:$0xff]
      %v369 = vld [vmem:[%s364 + $0x40] sm:$0xff]
      %v370 = vld [vmem:[%s364 + $0x50] sm:$0xff]
      %v371 = vld [vmem:[%s364 + $0x60] sm:$0xff]
      %v372 = vld [vmem:[%s364 + $0x70] sm:$0xff]
      %v373 = vld [vmem:[%s364 + $0x1] sm:$0xff]
      %v374 = vld [vmem:[%s364 + $0x11] sm:$0xff]
      %v375 = vld [vmem:[%s364 + $0x21] sm:$0xff]
      %v376 = vld [vmem:[%s364 + $0x31] sm:$0xff]
      %v377 = vld [vmem:[%s364 + $0x41] sm:$0xff]
      %v378 = vld [vmem:[%s364 + $0x51] sm:$0xff]
      %v379 = vld [vmem:[%s364 + $0x61] sm:$0xff]
      %v380 = vld [vmem:[%s364 + $0x71] sm:$0xff]
      %v381 = vld [vmem:[%s364 + $0x2] sm:$0xff]
      %v382 = vld [vmem:[%s364 + $0x12] sm:$0xff]
      %v383 = vld [vmem:[%s364 + $0x22] sm:$0xff]
      %v384 = vld [vmem:[%s364 + $0x32] sm:$0xff]
      %v385 = vld [vmem:[%s364 + $0x42] sm:$0xff]
      %v386 = vld [vmem:[%s364 + $0x52] sm:$0xff]
      %v387 = vld [vmem:[%s364 + $0x62] sm:$0xff]
      %v388 = vld [vmem:[%s364 + $0x72] sm:$0xff]
      %397 = vrot.lane.b32.xlu0 %v324, 8
      %v398 = vpop.permute.xlu0 %397
      %399 = vrot.lane.b32.xlu0 %v325, 8
      %v400 = vpop.permute.xlu0 %399
      %401 = vrot.lane.b32.xlu0 %v326, 8
      %v402 = vpop.permute.xlu0 %401
      %403 = vrot.lane.b32.xlu0 %v327, 8
      %v404 = vpop.permute.xlu0 %403
      %405 = vrot.lane.b32.xlu0 %v328, 8
      %v406 = vpop.permute.xlu0 %405
      %407 = vrot.lane.b32.xlu0 %v329, 8
      %v408 = vpop.permute.xlu0 %407
      %409 = vrot.lane.b32.xlu0 %v330, 8
      %v410 = vpop.permute.xlu0 %409
      %411 = vrot.lane.b32.xlu0 %v331, 8
      %v412 = vpop.permute.xlu0 %411
      %429 = vrot.lane.b32.xlu0 %v332, 16
      %v430 = vpop.permute.xlu0 %429
      %431 = vrot.lane.b32.xlu0 %v333, 16
      %v432 = vpop.permute.xlu0 %431
      %433 = vrot.lane.b32.xlu0 %v334, 16
      %v434 = vpop.permute.xlu0 %433
      %435 = vrot.lane.b32.xlu0 %v335, 16
      %v436 = vpop.permute.xlu0 %435
      %437 = vrot.lane.b32.xlu0 %v336, 16
      %v438 = vpop.permute.xlu0 %437
      %439 = vrot.lane.b32.xlu0 %v337, 16
      %v440 = vpop.permute.xlu0 %439
      %441 = vrot.lane.b32.xlu0 %v338, 16
      %v442 = vpop.permute.xlu0 %441
      %443 = vrot.lane.b32.xlu0 %v339, 16
      %v444 = vpop.permute.xlu0 %443
      %461 = vrot.lane.b32.xlu0 %v340, 24
      %v462 = vpop.permute.xlu0 %461
      %463 = vrot.lane.b32.xlu0 %v341, 24
      %v464 = vpop.permute.xlu0 %463
      %465 = vrot.lane.b32.xlu0 %v342, 24
      %v466 = vpop.permute.xlu0 %465
      %467 = vrot.lane.b32.xlu0 %v343, 24
      %v468 = vpop.permute.xlu0 %467
      %469 = vrot.lane.b32.xlu0 %v344, 24
      %v470 = vpop.permute.xlu0 %469
      %471 = vrot.lane.b32.xlu0 %v345, 24
      %v472 = vpop.permute.xlu0 %471
      %473 = vrot.lane.b32.xlu0 %v346, 24
      %v474 = vpop.permute.xlu0 %473
      %475 = vrot.lane.b32.xlu0 %v347, 24
      %v476 = vpop.permute.xlu0 %475
      %493 = vrot.lane.b32.xlu0 %v348, 32
      %v494 = vpop.permute.xlu0 %493
      %495 = vrot.lane.b32.xlu0 %v349, 32
      %v496 = vpop.permute.xlu0 %495
      %497 = vrot.lane.b32.xlu0 %v350, 32
      %v498 = vpop.permute.xlu0 %497
      %499 = vrot.lane.b32.xlu0 %v351, 32
      %v500 = vpop.permute.xlu0 %499
      %501 = vrot.lane.b32.xlu0 %v352, 32
      %v502 = vpop.permute.xlu0 %501
      %503 = vrot.lane.b32.xlu0 %v353, 32
      %v504 = vpop.permute.xlu0 %503
      %505 = vrot.lane.b32.xlu0 %v354, 32
      %v506 = vpop.permute.xlu0 %505
      %507 = vrot.lane.b32.xlu0 %v355, 32
      %v508 = vpop.permute.xlu0 %507
      %525 = vrot.lane.b32.xlu0 %v356, 40
      %v526 = vpop.permute.xlu0 %525
      %527 = vrot.lane.b32.xlu0 %v357, 40
      %v528 = vpop.permute.xlu0 %527
      %529 = vrot.lane.b32.xlu0 %v358, 40
      %v530 = vpop.permute.xlu0 %529
      %531 = vrot.lane.b32.xlu0 %v359, 40
      %v532 = vpop.permute.xlu0 %531
      %533 = vrot.lane.b32.xlu0 %v360, 40
      %v534 = vpop.permute.xlu0 %533
      %535 = vrot.lane.b32.xlu0 %v361, 40
      %v536 = vpop.permute.xlu0 %535
      %537 = vrot.lane.b32.xlu0 %v362, 40
      %v538 = vpop.permute.xlu0 %537
      %539 = vrot.lane.b32.xlu0 %v363, 40
      %v540 = vpop.permute.xlu0 %539
      %557 = vrot.lane.b32.xlu0 %v365, 48
      %v558 = vpop.permute.xlu0 %557
      %559 = vrot.lane.b32.xlu0 %v366, 48
      %v560 = vpop.permute.xlu0 %559
      %561 = vrot.lane.b32.xlu0 %v367, 48
      %v562 = vpop.permute.xlu0 %561
      %563 = vrot.lane.b32.xlu0 %v368, 48
      %v564 = vpop.permute.xlu0 %563
      %565 = vrot.lane.b32.xlu0 %v369, 48
      %v566 = vpop.permute.xlu0 %565
      %567 = vrot.lane.b32.xlu0 %v370, 48
      %v568 = vpop.permute.xlu0 %567
      %569 = vrot.lane.b32.xlu0 %v371, 48
      %v570 = vpop.permute.xlu0 %569
      %571 = vrot.lane.b32.xlu0 %v372, 48
      %v572 = vpop.permute.xlu0 %571
      %589 = vrot.lane.b32.xlu0 %v373, 56
      %v590 = vpop.permute.xlu0 %589
      %591 = vrot.lane.b32.xlu0 %v374, 56
      %v592 = vpop.permute.xlu0 %591
      %593 = vrot.lane.b32.xlu0 %v375, 56
      %v594 = vpop.permute.xlu0 %593
      %595 = vrot.lane.b32.xlu0 %v376, 56
      %v596 = vpop.permute.xlu0 %595
      %597 = vrot.lane.b32.xlu0 %v377, 56
      %v598 = vpop.permute.xlu0 %597
      %599 = vrot.lane.b32.xlu0 %v378, 56
      %v600 = vpop.permute.xlu0 %599
      %601 = vrot.lane.b32.xlu0 %v379, 56
      %v602 = vpop.permute.xlu0 %601
      %603 = vrot.lane.b32.xlu0 %v380, 56
      %v604 = vpop.permute.xlu0 %603
      %621 = vrot.lane.b32.xlu0 %v381, 64
      %v622 = vpop.permute.xlu0 %621
      %623 = vrot.lane.b32.xlu0 %v382, 64
      %v624 = vpop.permute.xlu0 %623
      %625 = vrot.lane.b32.xlu0 %v383, 64
      %v626 = vpop.permute.xlu0 %625
      %627 = vrot.lane.b32.xlu0 %v384, 64
      %v628 = vpop.permute.xlu0 %627
      %629 = vrot.lane.b32.xlu0 %v385, 64
      %v630 = vpop.permute.xlu0 %629
      %631 = vrot.lane.b32.xlu0 %v386, 64
      %v632 = vpop.permute.xlu0 %631
      %633 = vrot.lane.b32.xlu0 %v387, 64
      %v634 = vpop.permute.xlu0 %633
      %635 = vrot.lane.b32.xlu0 %v388, 64
      %v636 = vpop.permute.xlu0 %635
      %v645 = vsel %vm285, %v316, %v398
      %v646 = vsel %vm285, %v317, %v400
      %v647 = vsel %vm285, %v318, %v402
      %v648 = vsel %vm285, %v319, %v404
      %v649 = vsel %vm285, %v320, %v406
      %v650 = vsel %vm285, %v321, %v408
      %v651 = vsel %vm285, %v322, %v410
      %v652 = vsel %vm285, %v323, %v412
      %vm653 = vcmask 130048
      %v654 = vsel %vm653, %v645, %v430
      %v655 = vsel %vm653, %v646, %v432
      %v656 = vsel %vm653, %v647, %v434
      %v657 = vsel %vm653, %v648, %v436
      %v658 = vsel %vm653, %v649, %v438
      %v659 = vsel %vm653, %v650, %v440
      %v660 = vsel %vm653, %v651, %v442
      %v661 = vsel %vm653, %v652, %v444
      %vm662 = vcmask 195584
      %v663 = vsel %vm662, %v654, %v462
      %v664 = vsel %vm662, %v655, %v464
      %v665 = vsel %vm662, %v656, %v466
      %v666 = vsel %vm662, %v657, %v468
      %v667 = vsel %vm662, %v658, %v470
      %v668 = vsel %vm662, %v659, %v472
      %v669 = vsel %vm662, %v660, %v474
      %v670 = vsel %vm662, %v661, %v476
      %vm671 = vcmask 261120
      %v672 = vsel %vm671, %v663, %v494
      %v673 = vsel %vm671, %v664, %v496
      %v674 = vsel %vm671, %v665, %v498
      %v675 = vsel %vm671, %v666, %v500
      %v676 = vsel %vm671, %v667, %v502
      %v677 = vsel %vm671, %v668, %v504
      %v678 = vsel %vm671, %v669, %v506
      %v679 = vsel %vm671, %v670, %v508
      %vm680 = vcmask 326656
      %v681 = vsel %vm680, %v672, %v526
      %v682 = vsel %vm680, %v673, %v528
      %v683 = vsel %vm680, %v674, %v530
      %v684 = vsel %vm680, %v675, %v532
      %v685 = vsel %vm680, %v676, %v534
      %v686 = vsel %vm680, %v677, %v536
      %v687 = vsel %vm680, %v678, %v538
      %v688 = vsel %vm680, %v679, %v540
      %vm689 = vcmask 392192
      %v690 = vsel %vm689, %v681, %v558
      %v691 = vsel %vm689, %v682, %v560
      %v692 = vsel %vm689, %v683, %v562
      %v693 = vsel %vm689, %v684, %v564
      %v694 = vsel %vm689, %v685, %v566
      %v695 = vsel %vm689, %v686, %v568
      %v696 = vsel %vm689, %v687, %v570
      %v697 = vsel %vm689, %v688, %v572
      %vm698 = vcmask 457728
      %v699 = vsel %vm698, %v690, %v590
      %v700 = vsel %vm698, %v691, %v592
      %v701 = vsel %vm698, %v692, %v594
      %v702 = vsel %vm698, %v693, %v596
      %v703 = vsel %vm698, %v694, %v598
      %v704 = vsel %vm698, %v695, %v600
      %v705 = vsel %vm698, %v696, %v602
      %v706 = vsel %vm698, %v697, %v604
      %vm707 = vcmask 523264
      %v708 = vsel %vm707, %v699, %v622
      %v709 = vsel %vm707, %v700, %v624
      %v710 = vsel %vm707, %v701, %v626
      %v711 = vsel %vm707, %v702, %v628
      %v712 = vsel %vm707, %v703, %v630
      %v713 = vsel %vm707, %v704, %v632
      %v714 = vsel %vm707, %v705, %v634
      %v715 = vsel %vm707, %v706, %v636
      %v716 = vpack.c.bf16 %v709, %v708
      %v717 = vpack.c.bf16 %v711, %v710
      %v718 = vpack.c.bf16 %v713, %v712
      %v719 = vpack.c.bf16 %v715, %v714
      %v720 = vld [vmem:[%s3] sm:$0xf]
      %v721 = vld [vmem:[%s3 + $0x4] sm:$0xf]
      %v722 = vld [vmem:[%s3 + $0x8] sm:$0xf]
      %v723 = vld [vmem:[%s3 + $0xc] sm:$0xf]
      %v724 = vld [vmem:[%s3 + $0x10] sm:$0xf]
      %v725 = vld [vmem:[%s3 + $0x14] sm:$0xf]
      %v726 = vld [vmem:[%s3 + $0x18] sm:$0xf]
      %v727 = vld [vmem:[%s3 + $0x1c] sm:$0xf]
      %v728 = vld [vmem:[%s3 + $0x20] sm:$0xf]
      %v738 = vunpack.c.l.b16 %v720
      %v739 = vunpack.c.l.b16 %v721
      %v740 = vunpack.c.l.b16 %v722
      %v741 = vunpack.c.l.b16 %v723
      %v742 = vunpack.c.l.b16 %v724
      %v743 = vunpack.c.l.b16 %v725
      %v744 = vunpack.c.l.b16 %v726
      %v745 = vunpack.c.l.b16 %v727
      %v746 = vunpack.c.l.b16 %v728
      %v747 = vpack.c.b16 %v739, %v738
      %v748 = vpack.c.b16 %v741, %v740
      %v749 = vpack.c.b16 %v743, %v742
      %v750 = vpack.c.b16 %v745, %v744
      %v751 = vpack.c.b16 %v746, %v746
      %vm756 = vcmask 588800
      %v758 = vsel %vm756, %v716, 0
      %v761 = vsel %vm756, %v717, 0
      %v764 = vsel %vm756, %v718, 0
      %v767 = vsel %vm756, %v719, 0
      %vm769 = vcmask 1043456
      %v771 = vsel %vm769, %v751, 0
      %773 = vmatpush.bf16.msra.mxu0 0
      %774 = vmatpush.bf16.msra.mxu0 0
      %775 = vmatpush.bf16.msra.mxu0 0
      %776 = vmatpush.bf16.msra.mxu0 %v771
      %777 = vmatpush.bf16.msra.mxu0 %v750
      %778 = vmatpush.bf16.msra.mxu0 %v749
      %779 = vmatpush.bf16.msra.mxu0 %v748
      %780 = vmatpush.bf16.msra.mxu0 %v747
      %781 = vmatmul.bf16.gmra.mxu0 %v758
      %v782 = vpop.f32.mrf.mxu0
      %v783 = vadd.f32 0.0, %v782
      %v784 = vpop.f32.mrf.mxu0
      %v785 = vadd.f32 0.0, %v784
      %786 = vmatmul.bf16.gmra.mxu0 %v761
      %v787 = vpop.f32.mrf.mxu0
      %v788 = vadd.f32 0.0, %v787
      %v789 = vpop.f32.mrf.mxu0
      %v790 = vadd.f32 0.0, %v789
      %791 = vmatmul.bf16.gmra.mxu0 %v764
      %v792 = vpop.f32.mrf.mxu0
      %v793 = vadd.f32 0.0, %v792
      %v794 = vpop.f32.mrf.mxu0
      %v795 = vadd.f32 0.0, %v794
      %796 = vmatmul.bf16.gmra.mxu0 %v767
      %v797 = vpop.f32.mrf.mxu0
      %v798 = vadd.f32 0.0, %v797
      %v799 = vpop.f32.mrf.mxu0
      %v800 = vadd.f32 0.0, %v799
      %801 = vdwg.mxu0
      %v802 = vsel %vm285, %v783, 0.0
      %v803 = vsel %vm285, %v785, 0.0
      %v804 = vadd.f32 %v802, %v803
      %v805 = vsel %vm285, %v788, 0.0
      %v806 = vadd.f32 %v804, %v805
      %v807 = vsel %vm285, %v790, 0.0
      %v808 = vadd.f32 %v806, %v807
      %v809 = vsel %vm285, %v793, 0.0
      %v810 = vadd.f32 %v808, %v809
      %v811 = vsel %vm285, %v795, 0.0
      %v812 = vadd.f32 %v810, %v811
      %v813 = vsel %vm285, %v798, 0.0
      %v814 = vadd.f32 %v812, %v813
      %v815 = vsel %vm285, %v800, 0.0
      %v816 = vadd.f32 %v814, %v815
      %v817 = vrot.slane %v816, 4
      %v818 = vadd.f32 %v816, %v817
      %v819 = vrot.slane %v818, 2
      %v820 = vadd.f32 %v818, %v819
      %v821 = vrot.slane %v820, 1
      %v822 = vadd.f32 %v820, %v821
      %vm823 = vcmask 57344
      %824 = vst.msk [vmem:[%s235] sm:$0x1] %vm823, %v822
      %v825 = vmul.f32 %v783, %v783
      %v826 = vmul.f32 %v785, %v785
      %v827 = vmul.f32 %v788, %v788
      %v828 = vmul.f32 %v790, %v790
      %v829 = vmul.f32 %v793, %v793
      %v830 = vmul.f32 %v795, %v795
      %v831 = vmul.f32 %v798, %v798
      %v832 = vmul.f32 %v800, %v800
      %v833 = vsel %vm285, %v825, 0.0
      %v834 = vsel %vm285, %v826, 0.0
      %v835 = vadd.f32 %v833, %v834
      %v836 = vsel %vm285, %v827, 0.0
      %v837 = vadd.f32 %v835, %v836
      %v838 = vsel %vm285, %v828, 0.0
      %v839 = vadd.f32 %v837, %v838
      %v840 = vsel %vm285, %v829, 0.0
      %v841 = vadd.f32 %v839, %v840
      %v842 = vsel %vm285, %v830, 0.0
      %v843 = vadd.f32 %v841, %v842
      %v844 = vsel %vm285, %v831, 0.0
      %v845 = vadd.f32 %v843, %v844
      %v846 = vsel %vm285, %v832, 0.0
      %v847 = vadd.f32 %v845, %v846
      %v848 = vrot.slane %v847, 4
      %v849 = vadd.f32 %v847, %v848
      %v850 = vrot.slane %v849, 2
      %v851 = vadd.f32 %v849, %v850
      %v852 = vrot.slane %v851, 1
      %v853 = vadd.f32 %v851, %v852
      %854 = vst.msk [vmem:[%s235 + $0x1] sm:$0x1] %vm823, %v853
      %v855 = vpack.c.bf16 %v783, %v783
      %v856 = vpack.c.bf16 %v785, %v785
      %v857 = vpack.c.bf16 %v788, %v788
      %v858 = vpack.c.bf16 %v790, %v790
      %v859 = vpack.c.bf16 %v793, %v793
      %v860 = vpack.c.bf16 %v795, %v795
      %v861 = vpack.c.bf16 %v798, %v798
      %v862 = vpack.c.bf16 %v800, %v800
      %vm863 = vcmask 60416
      %864 = vst.msk [vmem:[%s231] sm:$0xf] %vm863, %v855
      %865 = vst.msk [vmem:[%s231 + $0x4] sm:$0xf] %vm863, %v856
      %866 = vst.msk [vmem:[%s231 + $0x8] sm:$0xf] %vm863, %v857
      %867 = vst.msk [vmem:[%s231 + $0xc] sm:$0xf] %vm863, %v858
      %868 = vst.msk [vmem:[%s231 + $0x10] sm:$0xf] %vm863, %v859
      %869 = vst.msk [vmem:[%s231 + $0x14] sm:$0xf] %vm863, %v860
      %870 = vst.msk [vmem:[%s231 + $0x18] sm:$0xf] %vm863, %v861
      %871 = vst.msk [vmem:[%s231 + $0x1c] sm:$0xf] %vm863, %v862
      %p872 = scmp.lt.s32.totalorder %s17, 1
      %s873 = scalar_select %p872, %s17, 1
      %s874 = smul.addr %s873, 8
      %s875 = smul.addr %s874, 4
      %s876 = scalar_lea.vmem %s4, %s875
      %p877 = scmp.lt.s32.totalorder %s17, 1
      %s878 = scalar_select %p877, %s17, 1
      %s879 = smul.addr %s878, 2
      %s880 = scalar_lea.vmem %s5, %s879
      // Predicated region
      $region37: #{down_forward.4} parent=35 // pred_check
        %p881 = pneg %p124
      $region38: #{down_forward.4} parent=35 // pred_check_branch
        %883 = sbr.rel (%p881) target = $region40
      $region39: #{down_forward.4} parent=35 // pred_region
        _
      $region40: #{down_forward.4} parent=35 // pred_fallthru
        _
      // Predicated region
      $region41: #{down_forward.4} parent=35 // pred_check
        %p884 = pneg %p150
      $region42: #{down_forward.4} parent=35 // pred_check_branch
        %886 = sbr.rel (%p884) target = $region44
      $region43: #{down_forward.4} parent=35 // pred_region
        _
      $region44: #{down_forward.4} parent=35 // pred_fallthru
        _
    $region36: #{down_forward.4} parent=5 // pred_fallthru
      _
    %p887 = scmp.le.s32.totalorder 2, %s12
    // Predicated region
    $region45: #{down_forward.4} parent=5 // pred_check
      %p888 = pneg %p887
    $region46: #{down_forward.4} parent=5 // pred_check_branch
      %890 = sbr.rel (%p888) target = $region48
    $region47: #{down_forward.4} parent=5 // pred_region
      %s891 = ssub.s32 %s12, 2
      // Predicated region
      $region49: #{down_forward.4} parent=47 // pred_check
        %p892 = pneg %p130
      $region50: #{down_forward.4} parent=47 // pred_check_branch
        %894 = sbr.rel (%p892) target = $region52
      $region51: #{down_forward.4} parent=47 // pred_region
        %p895 = scmp.lt.s32.totalorder %s18, 1
        %s896 = scalar_select %p895, %s18, 1
        %s897 = smul.addr %s896, 8
        %s898 = smul.addr %s897, 4
        %s899 = scalar_lea.vmem %s4, %s898
      $region52: #{down_forward.4} parent=47 // pred_fallthru
        _
      // Predicated region
      $region53: #{down_forward.4} parent=47 // pred_check
        %p900 = pneg %p156
      $region54: #{down_forward.4} parent=47 // pred_check_branch
        %902 = sbr.rel (%p900) target = $region56
      $region55: #{down_forward.4} parent=47 // pred_region
        %p903 = scmp.lt.s32.totalorder %s18, 1
        %s904 = scalar_select %p903, %s18, 1
        %s905 = smul.addr %s904, 2
        %s906 = scalar_lea.vmem %s5, %s905
      $region56: #{down_forward.4} parent=47 // pred_fallthru
        _
    $region48: #{down_forward.4} parent=5 // pred_fallthru
      _
  $region6: #{down_forward.4} parent=0 // loop_footer
    %s16 = sadd.s32 1, %s12
  $region7: #{down_forward.4} parent=0 // loop_footer_branch
    %11 = sbr.rel target = $region3
  $region8: #{down_forward.4} parent=0 // loop_exit
    _

// kernel: down_forward.3
$region0: #{down_forward.3}
  #allocation0 [shape = 'u32[]', space=smem, size = 0x4, offset = 0x4, fixed_abs, tag = 'smem constant byte address 0x4 - core index']
  #allocation1 [shape = 'u32[72,128]{1,0:T(1,128)}', space=vmem, size = 0x9000, scoped, tag = 'internal scratch']
  #allocation2 [shape = 'f32[8,16,4]{2,1,0:T(8,128)}', space=vmem, size = 0x10000, scoped, tag = 'scratch operand']
  #allocation3 [shape = 'f32[10,10,4]{2,1,0:T(8,128)}', space=vmem, size = 0x14000, scoped, tag = 'scratch operand']
  %s0 = inlined_call_operand.vmem [shape: f32[2,16,16,4], index: 0, kind: input, shape index: {}]
  %s1 = inlined_call_operand.vmem [shape: bf16[36,8], index: 1, kind: input, shape index: {}]
  %s2 = inlined_call_operand.vmem [shape: bf16[2,8,8,8], index: 2, kind: output, shape index: {0}]
  %s3 = inlined_call_operand.vmem [shape: f32[2,2,8], index: 3, kind: output, shape index: {1}]
  %4 = xla_tuple %s2, %s3
  %s5 = sld [smem:[#allocation0]]
  $region49: #{down_forward.3} parent=0
    _
  %s7 = ssub.s32 1, %s5
  %s8 = scalar_select 0, %s7, %s5
  loop: start=0, step=1, limit=4
  $region2: #{down_forward.3} parent=0 // loop_pre_header
    _
  $region3: #{down_forward.3} parent=0 // loop_header
    %s10 = sphi 0, %s14
    %p11 = scmp.ge.s32.totalorder %s10, 4
    %s20 = sphi 0, %s22
    %s23 = sphi 0, %s20
    %s24 = sphi 0, %s23
    %s40 = sphi 0, %s24
    %s44 = sphi 0, %s44
    %s46 = sphi 0, %s44
    %s47 = sphi 0, %s46
    %s61 = sphi 0, %s47
    %s67 = sphi 0, %s69
    %s70 = sphi 0, %s67
    %s71 = sphi 0, %s70
    %s87 = sphi 0, %s71
    %s93 = sphi 0, %s95
    %s96 = sphi 0, %s93
    %s97 = sphi 0, %s96
    %s113 = sphi 0, %s97
  $region4: #{down_forward.3} parent=0 // loop_header_branch
    %13 = sbr.rel (%p11) target = $region8
  $region5: #{down_forward.3} parent=0 // loop_body
    %s15 = ssub.s32 %s10, 1
    %s16 = ssub.s32 %s10, 2
    %s17 = sadd.s32 %s10, 1
    %s18 = ssub.s32 %s10, %s17
    %p19 = scmp.eq.s32.totalorder %s18, 0
    %s21 = sadd.s32 %s20, 1
    %s22 = scalar_select %p19, %s20, %s21
    %p25 = pneg %p19
    %p26 = scmp.eq.s32.totalorder %s10, 1
    %p27 = por %p25, %p26
    %p28 = scmp.ne.s32.totalorder %s20, %s23
    %p29 = scmp.eq.s32.totalorder %s10, 0
    %p30 = por %p28, %p29
    %p31 = scmp.ne.s32.totalorder %s20, %s23
    %p32 = scmp.eq.s32.totalorder %s15, 1
    %p33 = por %p31, %p32
    %p34 = scmp.ne.s32.totalorder %s23, %s24
    %p35 = scmp.eq.s32.totalorder %s15, 0
    %p36 = por %p34, %p35
    %p37 = scmp.ne.s32.totalorder %s23, %s24
    %p38 = scmp.eq.s32.totalorder %s16, 1
    %p39 = por %p37, %p38
    %p41 = scmp.ne.s32.totalorder %s24, %s40
    %p42 = scmp.eq.s32.totalorder %s16, 0
    %p43 = por %p41, %p42
    %s45 = sadd.s32 %s44, 1
    %p48 = scmp.eq.s32.totalorder %s10, 1
    %p49 = scmp.ne.s32.totalorder %s44, %s46
    %p50 = scmp.eq.s32.totalorder %s10, 0
    %p51 = por %p49, %p50
    %p52 = scmp.ne.s32.totalorder %s44, %s46
    %p53 = scmp.eq.s32.totalorder %s15, 1
    %p54 = por %p52, %p53
    %p55 = scmp.ne.s32.totalorder %s46, %s47
    %p56 = scmp.eq.s32.totalorder %s15, 0
    %p57 = por %p55, %p56
    %p58 = scmp.ne.s32.totalorder %s46, %s47
    %p59 = scmp.eq.s32.totalorder %s16, 1
    %p60 = por %p58, %p59
    %p62 = scmp.ne.s32.totalorder %s47, %s61
    %p63 = scmp.eq.s32.totalorder %s16, 0
    %p64 = por %p62, %p63
    %s65 = ssub.s32 %s10, %s17
    %p66 = scmp.eq.s32.totalorder %s65, 0
    %s68 = sadd.s32 %s67, 1
    %s69 = scalar_select %p66, %s67, %s68
    %p72 = pneg %p66
    %p73 = scmp.eq.s32.totalorder %s10, 1
    %p74 = por %p72, %p73
    %p75 = scmp.ne.s32.totalorder %s67, %s70
    %p76 = scmp.eq.s32.totalorder %s10, 0
    %p77 = por %p75, %p76
    %p78 = scmp.ne.s32.totalorder %s67, %s70
    %p79 = scmp.eq.s32.totalorder %s15, 1
    %p80 = por %p78, %p79
    %p81 = scmp.ne.s32.totalorder %s70, %s71
    %p82 = scmp.eq.s32.totalorder %s15, 0
    %p83 = por %p81, %p82
    %p84 = scmp.ne.s32.totalorder %s70, %s71
    %p85 = scmp.eq.s32.totalorder %s16, 1
    %p86 = por %p84, %p85
    %p88 = scmp.ne.s32.totalorder %s71, %s87
    %p89 = scmp.eq.s32.totalorder %s16, 0
    %p90 = por %p88, %p89
    %s91 = ssub.s32 %s10, %s17
    %p92 = scmp.eq.s32.totalorder %s91, 0
    %s94 = sadd.s32 %s93, 1
    %s95 = scalar_select %p92, %s93, %s94
    %p98 = pneg %p92
    %p99 = scmp.eq.s32.totalorder %s10, 1
    %p100 = por %p98, %p99
    %p101 = scmp.ne.s32.totalorder %s93, %s96
    %p102 = scmp.eq.s32.totalorder %s10, 0
    %p103 = por %p101, %p102
    %p104 = scmp.ne.s32.totalorder %s93, %s96
    %p105 = scmp.eq.s32.totalorder %s15, 1
    %p106 = por %p104, %p105
    %p107 = scmp.ne.s32.totalorder %s96, %s97
    %p108 = scmp.eq.s32.totalorder %s15, 0
    %p109 = por %p107, %p108
    %p110 = scmp.ne.s32.totalorder %s96, %s97
    %p111 = scmp.eq.s32.totalorder %s16, 1
    %p112 = por %p110, %p111
    %p114 = scmp.ne.s32.totalorder %s97, %s113
    %p115 = scmp.eq.s32.totalorder %s16, 0
    %p116 = por %p114, %p115
    %p117 = scmp.le.s32.totalorder 1, %s10
    %p118 = scmp.lt.s32.totalorder %s10, 3
    %p119 = pnand %p117, %p118
    %p120 = pneg %p119
    // Predicated region
    $region9: #{down_forward.3} parent=5 // pred_check
      _
    $region10: #{down_forward.3} parent=5 // pred_check_branch
      %122 = sbr.rel (%p119) target = $region12
    $region11: #{down_forward.3} parent=5 // pred_region
      %s123 = ssub.s32 %s10, 1
      // Predicated region
      $region13: #{down_forward.3} parent=11 // pred_check
        %p124 = pneg %p57
      $region14: #{down_forward.3} parent=11 // pred_check_branch
        %126 = sbr.rel (%p124) target = $region16
      $region15: #{down_forward.3} parent=11 // pred_region
        _
      $region16: #{down_forward.3} parent=11 // pred_fallthru
        _
    $region12: #{down_forward.3} parent=5 // pred_fallthru
      _
    %p127 = scmp.lt.s32.totalorder %s10, 2
    // Predicated region
    $region17: #{down_forward.3} parent=5 // pred_check
      %p128 = pneg %p127
    $region18: #{down_forward.3} parent=5 // pred_check_branch
      %130 = sbr.rel (%p128) target = $region20
    $region19: #{down_forward.3} parent=5 // pred_region
      // Predicated region
      $region21: #{down_forward.3} parent=19 // pred_check
        %p131 = pneg %p30
      $region22: #{down_forward.3} parent=19 // pred_check_branch
        %133 = sbr.rel (%p131) target = $region24
      $region23: #{down_forward.3} parent=19 // pred_region
        %p134 = scmp.lt.s32.totalorder %s10, 1
        %s135 = scalar_select %p134, %s10, 1
        %s136 = smul.addr %s135, 32
        %s137 = smul.addr %s136, 8
        %s138 = scalar_lea.vmem %s0, %s137
      $region24: #{down_forward.3} parent=19 // pred_fallthru
        _
    $region20: #{down_forward.3} parent=5 // pred_fallthru
      _
    %p139 = scmp.le.s32.totalorder 1, %s10
    %p140 = scmp.lt.s32.totalorder %s10, 3
    %p141 = pnand %p139, %p140
    %p142 = pneg %p141
    // Predicated region
    $region25: #{down_forward.3} parent=5 // pred_check
      _
    $region26: #{down_forward.3} parent=5 // pred_check_branch
      %144 = sbr.rel (%p141) target = $region28
    $region27: #{down_forward.3} parent=5 // pred_region
      %s145 = ssub.s32 %s10, 1
      %p146 = scmp.lt.s32.totalorder %s15, 1
      %s147 = scalar_select %p146, %s15, 1
      %s148 = smul.addr %s147, 32
      %s149 = smul.addr %s148, 8
      %s150 = scalar_lea.vmem %s0, %s149
      %p151 = pneg %p36
      %p152 = pneg %p33
      %p153 = pneg %p57
      %p154 = pneg %p54
      %p155 = pneg %p83
      %p156 = pneg %p80
      %p157 = scmp.lt.s32.totalorder %s15, 1
      %s158 = scalar_select %p157, %s15, 1
      %s159 = smul.addr %s158, 8
      %s160 = smul.addr %s159, 4
      %s161 = scalar_lea.vmem %s2, %s160
      %p162 = pneg %p109
      %p163 = pneg %p106
      %p164 = scmp.lt.s32.totalorder %s15, 1
      %s165 = scalar_select %p164, %s15, 1
      %s166 = smul.addr %s165, 2
      %s167 = scalar_lea.vmem %s3, %s166
      %p168 = scmp.lt.s32.totalorder %s15, 1
      %s169 = scalar_select %p168, %s15, 1
      %s170 = smul.addr %s169, 32
      %s171 = smul.addr %s170, 8
      %s172 = scalar_lea.vmem %s0, %s171
      %p173 = scmp.lt.s32.totalorder %s15, 1
      %s174 = scalar_select %p173, %s15, 1
      %s175 = smul.addr %s174, 8
      %s176 = smul.addr %s175, 4
      %s177 = scalar_lea.vmem %s2, %s176
      %p178 = scmp.lt.s32.totalorder %s15, 1
      %s179 = scalar_select %p178, %s15, 1
      %s180 = smul.addr %s179, 2
      %s181 = scalar_lea.vmem %s3, %s180
      %v183 = vld [vmem:[%s172] sm:$0xff]
      %v184 = vld [vmem:[%s172 + $0x8] sm:$0xff]
      %v185 = vld [vmem:[%s172 + $0x20] sm:$0xff]
      %v186 = vld [vmem:[%s172 + $0x28] sm:$0xff]
      %v187 = vld [vmem:[%s172 + $0x40] sm:$0xff]
      %v188 = vld [vmem:[%s172 + $0x48] sm:$0xff]
      %v189 = vld [vmem:[%s172 + $0x60] sm:$0xff]
      %v190 = vld [vmem:[%s172 + $0x68] sm:$0xff]
      %v191 = vld [vmem:[%s172 + $0x80] sm:$0xff]
      %v192 = vld [vmem:[%s172 + $0x88] sm:$0xff]
      %v193 = vld [vmem:[%s172 + $0xa0] sm:$0xff]
      %v194 = vld [vmem:[%s172 + $0xa8] sm:$0xff]
      %v195 = vld [vmem:[%s172 + $0xc0] sm:$0xff]
      %v196 = vld [vmem:[%s172 + $0xc8] sm:$0xff]
      %v197 = vld [vmem:[%s172 + $0xe0] sm:$0xff]
      %v198 = vld [vmem:[%s172 + $0xe8] sm:$0xff]
      %s199 = scalar_lea.vmem %s172, 16
      %v200 = vld [vmem:[%s199] sm:$0xff]
      %v201 = vld [vmem:[%s199 + $0x8] sm:$0xff]
      %v202 = vld [vmem:[%s199 + $0x20] sm:$0xff]
      %v203 = vld [vmem:[%s199 + $0x28] sm:$0xff]
      %v204 = vld [vmem:[%s199 + $0x40] sm:$0xff]
      %v205 = vld [vmem:[%s199 + $0x48] sm:$0xff]
      %v206 = vld [vmem:[%s199 + $0x60] sm:$0xff]
      %v207 = vld [vmem:[%s199 + $0x68] sm:$0xff]
      %v208 = vld [vmem:[%s199 + $0x80] sm:$0xff]
      %v209 = vld [vmem:[%s199 + $0x88] sm:$0xff]
      %v210 = vld [vmem:[%s199 + $0xa0] sm:$0xff]
      %v211 = vld [vmem:[%s199 + $0xa8] sm:$0xff]
      %v212 = vld [vmem:[%s199 + $0xc0] sm:$0xff]
      %v213 = vld [vmem:[%s199 + $0xc8] sm:$0xff]
      %v214 = vld [vmem:[%s199 + $0xe0] sm:$0xff]
      %v215 = vld [vmem:[%s199 + $0xe8] sm:$0xff]
      %v216 = vmax.f32 %v183, %v200
      %v217 = vmax.f32 %v184, %v201
      %v218 = vmax.f32 %v185, %v202
      %v219 = vmax.f32 %v186, %v203
      %v220 = vmax.f32 %v187, %v204
      %v221 = vmax.f32 %v188, %v205
      %v222 = vmax.f32 %v189, %v206
      %v223 = vmax.f32 %v190, %v207
      %v224 = vmax.f32 %v191, %v208
      %v225 = vmax.f32 %v192, %v209
      %v226 = vmax.f32 %v193, %v210
      %v227 = vmax.f32 %v194, %v211
      %v228 = vmax.f32 %v195, %v212
      %v229 = vmax.f32 %v196, %v213
      %v230 = vmax.f32 %v197, %v214
      %v231 = vmax.f32 %v198, %v215
      %vm232 = vcmask 31744
      %233 = vst.msk [vmem:[#allocation2] sm:$0xff] %vm232, %v216
      %234 = vst.msk [vmem:[#allocation2 + $0x8] sm:$0xff] %vm232, %v217
      %235 = vst.msk [vmem:[#allocation2 + $0x10] sm:$0xff] %vm232, %v218
      %236 = vst.msk [vmem:[#allocation2 + $0x18] sm:$0xff] %vm232, %v219
      %237 = vst.msk [vmem:[#allocation2 + $0x20] sm:$0xff] %vm232, %v220
      %238 = vst.msk [vmem:[#allocation2 + $0x28] sm:$0xff] %vm232, %v221
      %239 = vst.msk [vmem:[#allocation2 + $0x30] sm:$0xff] %vm232, %v222
      %240 = vst.msk [vmem:[#allocation2 + $0x38] sm:$0xff] %vm232, %v223
      %241 = vst.msk [vmem:[#allocation2 + $0x40] sm:$0xff] %vm232, %v224
      %242 = vst.msk [vmem:[#allocation2 + $0x48] sm:$0xff] %vm232, %v225
      %243 = vst.msk [vmem:[#allocation2 + $0x50] sm:$0xff] %vm232, %v226
      %244 = vst.msk [vmem:[#allocation2 + $0x58] sm:$0xff] %vm232, %v227
      %245 = vst.msk [vmem:[#allocation2 + $0x60] sm:$0xff] %vm232, %v228
      %246 = vst.msk [vmem:[#allocation2 + $0x68] sm:$0xff] %vm232, %v229
      %247 = vst.msk [vmem:[#allocation2 + $0x70] sm:$0xff] %vm232, %v230
      %248 = vst.msk [vmem:[#allocation2 + $0x78] sm:$0xff] %vm232, %v231
      %v249 = vld [vmem:[#allocation2] ss:$2 sm:$0xff]
      %s250 = scalar_lea.vmem [#allocation2], 16
      %v251 = vld [vmem:[%s250] ss:$2 sm:$0xff]
      %s252 = scalar_lea.vmem [#allocation2], 32
      %v253 = vld [vmem:[%s252] ss:$2 sm:$0xff]
      %s254 = scalar_lea.vmem [#allocation2], 48
      %v255 = vld [vmem:[%s254] ss:$2 sm:$0xff]
      %s256 = scalar_lea.vmem [#allocation2], 64
      %v257 = vld [vmem:[%s256] ss:$2 sm:$0xff]
      %s258 = scalar_lea.vmem [#allocation2], 80
      %v259 = vld [vmem:[%s258] ss:$2 sm:$0xff]
      %s260 = scalar_lea.vmem [#allocation2], 96
      %v261 = vld [vmem:[%s260] ss:$2 sm:$0xff]
      %s262 = scalar_lea.vmem [#allocation2], 112
      %v263 = vld [vmem:[%s262] ss:$2 sm:$0xff]
      %s264 = scalar_lea.vmem [#allocation2], 1
      %v265 = vld [vmem:[%s264] ss:$2 sm:$0xff]
      %s266 = scalar_lea.vmem [#allocation2], 17
      %v267 = vld [vmem:[%s266] ss:$2 sm:$0xff]
      %s268 = scalar_lea.vmem [#allocation2], 33
      %v269 = vld [vmem:[%s268] ss:$2 sm:$0xff]
      %s270 = scalar_lea.vmem [#allocation2], 49
      %v271 = vld [vmem:[%s270] ss:$2 sm:$0xff]
      %s272 = scalar_lea.vmem [#allocation2], 65
      %v273 = vld [vmem:[%s272] ss:$2 sm:$0xff]
      %s274 = scalar_lea.vmem [#allocation2], 81
      %v275 = vld [vmem:[%s274] ss:$2 sm:$0xff]
      %s276 = scalar_lea.vmem [#allocation2], 97
      %v277 = vld [vmem:[%s276] ss:$2 sm:$0xff]
      %s278 = scalar_lea.vmem [#allocation2], 113
      %v279 = vld [vmem:[%s278] ss:$2 sm:$0xff]
      %v280 = vmax.f32 %v249, %v265
      %v281 = vmax.f32 %v251, %v267
      %v282 = vmax.f32 %v253, %v269
      %v283 = vmax.f32 %v255, %v271
      %v284 = vmax.f32 %v257, %v273
      %v285 = vmax.f32 %v259, %v275
      %v286 = vmax.f32 %v261, %v277
      %v287 = vmax.f32 %v263, %v279
      %288 = vst.msk [vmem:[#allocation3] sm:$0xff] %vm232, 0.0
      %vm289 = vcmask 25600
      %290 = vst.msk [vmem:[#allocation3 + $0x8] sm:$0x3] %vm289, 0.0
      %291 = vst.msk [vmem:[#allocation3 + $0x10] sm:$0xff] %vm232, 0.0
      %292 = vst.msk [vmem:[#allocation3 + $0x18] sm:$0x3] %vm289, 0.0
      %293 = vst.msk [vmem:[#allocation3 + $0x20] sm:$0xff] %vm232, 0.0
      %294 = vst.msk [vmem:[#allocation3 + $0x28] sm:$0x3] %vm289, 0.0
      %295 = vst.msk [vmem:[#allocation3 + $0x30] sm:$0xff] %vm232, 0.0
      %296 = vst.msk [vmem:[#allocation3 + $0x38] sm:$0x3] %vm289, 0.0
      %297 = vst.msk [vmem:[#allocation3 + $0x40] sm:$0xff] %vm232, 0.0
      %298 = vst.msk [vmem:[#allocation3 + $0x48] sm:$0x3] %vm289, 0.0
      %299 = vst.msk [vmem:[#allocation3 + $0x50] sm:$0xff] %vm232, 0.0
      %300 = vst.msk [vmem:[#allocation3 + $0x58] sm:$0x3] %vm289, 0.0
      %301 = vst.msk [vmem:[#allocation3 + $0x60] sm:$0xff] %vm232, 0.0
      %302 = vst.msk [vmem:[#allocation3 + $0x68] sm:$0x3] %vm289, 0.0
      %303 = vst.msk [vmem:[#allocation3 + $0x70] sm:$0xff] %vm232, 0.0
      %304 = vst.msk [vmem:[#allocation3 + $0x78] sm:$0x3] %vm289, 0.0
      %305 = vst.msk [vmem:[#allocation3 + $0x80] sm:$0xff] %vm232, 0.0
      %306 = vst.msk [vmem:[#allocation3 + $0x88] sm:$0x3] %vm289, 0.0
      %307 = vst.msk [vmem:[#allocation3 + $0x90] sm:$0xff] %vm232, 0.0
      %308 = vst.msk [vmem:[#allocation3 + $0x98] sm:$0x3] %vm289, 0.0
      %s309 = scalar_lea.vmem [#allocation3], 16
      %310 = vst.msk [vmem:[%s309 + $0x1] sm:$0xff] %vm232, %v280
      %311 = vst.msk [vmem:[%s309 + $0x11] sm:$0xff] %vm232, %v281
      %312 = vst.msk [vmem:[%s309 + $0x21] sm:$0xff] %vm232, %v282
      %313 = vst.msk [vmem:[%s309 + $0x31] sm:$0xff] %vm232, %v283
      %314 = vst.msk [vmem:[%s309 + $0x41] sm:$0xff] %vm232, %v284
      %315 = vst.msk [vmem:[%s309 + $0x51] sm:$0xff] %vm232, %v285
      %316 = vst.msk [vmem:[%s309 + $0x61] sm:$0xff] %vm232, %v286
      %317 = vst.msk [vmem:[%s309 + $0x71] sm:$0xff] %vm232, %v287
      %v318 = vld [vmem:[#allocation3] sm:$0xff]
      %v319 = vld [vmem:[#allocation3 + $0x10] sm:$0xff]
      %v320 = vld [vmem:[#allocation3 + $0x20] sm:$0xff]
      %v321 = vld [vmem:[#allocation3 + $0x30] sm:$0xff]
      %v322 = vld [vmem:[#allocation3 + $0x40] sm:$0xff]
      %v323 = vld [vmem:[#allocation3 + $0x50] sm:$0xff]
      %v324 = vld [vmem:[#allocation3 + $0x60] sm:$0xff]
      %v325 = vld [vmem:[#allocation3 + $0x70] sm:$0xff]
      %v326 = vld [vmem:[#allocation3 + $0x1] sm:$0xff]
      %v327 = vld [vmem:[#allocation3 + $0x11] sm:$0xff]
      %v328 = vld [vmem:[#allocation3 + $0x21] sm:$0xff]
      %v329 = vld [vmem:[#allocation3 + $0x31] sm:$0xff]
      %v330 = vld [vmem:[#allocation3 + $0x41] sm:$0xff]
      %v331 = vld [vmem:[#allocation3 + $0x51] sm:$0xff]
      %v332 = vld [vmem:[#allocation3 + $0x61] sm:$0xff]
      %v333 = vld [vmem:[#allocation3 + $0x71] sm:$0xff]
      %v334 = vld [vmem:[#allocation3 + $0x2] sm:$0xff]
      %v335 = vld [vmem:[#allocation3 + $0x12] sm:$0xff]
      %v336 = vld [vmem:[#allocation3 + $0x22] sm:$0xff]
      %v337 = vld [vmem:[#allocation3 + $0x32] sm:$0xff]
      %v338 = vld [vmem:[#allocation3 + $0x42] sm:$0xff]
      %v339 = vld [vmem:[#allocation3 + $0x52] sm:$0xff]
      %v340 = vld [vmem:[#allocation3 + $0x62] sm:$0xff]
      %v341 = vld [vmem:[#allocation3 + $0x72] sm:$0xff]
      %v342 = vld [vmem:[%s309] sm:$0xff]
      %v343 = vld [vmem:[%s309 + $0x10] sm:$0xff]
      %v344 = vld [vmem:[%s309 + $0x20] sm:$0xff]
      %v345 = vld [vmem:[%s309 + $0x30] sm:$0xff]
      %v346 = vld [vmem:[%s309 + $0x40] sm:$0xff]
      %v347 = vld [vmem:[%s309 + $0x50] sm:$0xff]
      %v348 = vld [vmem:[%s309 + $0x60] sm:$0xff]
      %v349 = vld [vmem:[%s309 + $0x70] sm:$0xff]
      %v350 = vld [vmem:[%s309 + $0x1] sm:$0xff]
      %v351 = vld [vmem:[%s309 + $0x11] sm:$0xff]
      %v352 = vld [vmem:[%s309 + $0x21] sm:$0xff]
      %v353 = vld [vmem:[%s309 + $0x31] sm:$0xff]
      %v354 = vld [vmem:[%s309 + $0x41] sm:$0xff]
      %v355 = vld [vmem:[%s309 + $0x51] sm:$0xff]
      %v356 = vld [vmem:[%s309 + $0x61] sm:$0xff]
      %v357 = vld [vmem:[%s309 + $0x71] sm:$0xff]
      %v358 = vld [vmem:[%s309 + $0x2] sm:$0xff]
      %v359 = vld [vmem:[%s309 + $0x12] sm:$0xff]
      %v360 = vld [vmem:[%s309 + $0x22] sm:$0xff]
      %v361 = vld [vmem:[%s309 + $0x32] sm:$0xff]
      %v362 = vld [vmem:[%s309 + $0x42] sm:$0xff]
      %v363 = vld [vmem:[%s309 + $0x52] sm:$0xff]
      %v364 = vld [vmem:[%s309 + $0x62] sm:$0xff]
      %v365 = vld [vmem:[%s309 + $0x72] sm:$0xff]
      %s366 = scalar_lea.vmem [#allocation3], 32
      %v367 = vld [vmem:[%s366] sm:$0xff]
      %v368 = vld [vmem:[%s366 + $0x10] sm:$0xff]
      %v369 = vld [vmem:[%s366 + $0x20] sm:$0xff]
      %v370 = vld [vmem:[%s366 + $0x30] sm:$0xff]
      %v371 = vld [vmem:[%s366 + $0x40] sm:$0xff]
      %v372 = vld [vmem:[%s366 + $0x50] sm:$0xff]
      %v373 = vld [vmem:[%s366 + $0x60] sm:$0xff]
      %v374 = vld [vmem:[%s366 + $0x70] sm:$0xff]
      %v375 = vld [vmem:[%s366 + $0x1] sm:$0xff]
      %v376 = vld [vmem:[%s366 + $0x11] sm:$0xff]
      %v377 = vld [vmem:[%s366 + $0x21] sm:$0xff]
      %v378 = vld [vmem:[%s366 + $0x31] sm:$0xff]
      %v379 = vld [vmem:[%s366 + $0x41] sm:$0xff]
      %v380 = vld [vmem:[%s366 + $0x51] sm:$0xff]
      %v381 = vld [vmem:[%s366 + $0x61] sm:$0xff]
      %v382 = vld [vmem:[%s366 + $0x71] sm:$0xff]
      %v383 = vld [vmem:[%s366 + $0x2] sm:$0xff]
      %v384 = vld [vmem:[%s366 + $0x12] sm:$0xff]
      %v385 = vld [vmem:[%s366 + $0x22] sm:$0xff]
      %v386 = vld [vmem:[%s366 + $0x32] sm:$0xff]
      %v387 = vld [vmem:[%s366 + $0x42] sm:$0xff]
      %v388 = vld [vmem:[%s366 + $0x52] sm:$0xff]
      %v389 = vld [vmem:[%s366 + $0x62] sm:$0xff]
      %v390 = vld [vmem:[%s366 + $0x72] sm:$0xff]
      %399 = vrot.lane.b32.xlu0 %v326, 4
      %v400 = vpop.permute.xlu0 %399
      %401 = vrot.lane.b32.xlu0 %v327, 4
      %v402 = vpop.permute.xlu0 %401
      %403 = vrot.lane.b32.xlu0 %v328, 4
      %v404 = vpop.permute.xlu0 %403
      %405 = vrot.lane.b32.xlu0 %v329, 4
      %v406 = vpop.permute.xlu0 %405
      %407 = vrot.lane.b32.xlu0 %v330, 4
      %v408 = vpop.permute.xlu0 %407
      %409 = vrot.lane.b32.xlu0 %v331, 4
      %v410 = vpop.permute.xlu0 %409
      %411 = vrot.lane.b32.xlu0 %v332, 4
      %v412 = vpop.permute.xlu0 %411
      %413 = vrot.lane.b32.xlu0 %v333, 4
      %v414 = vpop.permute.xlu0 %413
      %431 = vrot.lane.b32.xlu0 %v334, 8
      %v432 = vpop.permute.xlu0 %431
      %433 = vrot.lane.b32.xlu0 %v335, 8
      %v434 = vpop.permute.xlu0 %433
      %435 = vrot.lane.b32.xlu0 %v336, 8
      %v436 = vpop.permute.xlu0 %435
      %437 = vrot.lane.b32.xlu0 %v337, 8
      %v438 = vpop.permute.xlu0 %437
      %439 = vrot.lane.b32.xlu0 %v338, 8
      %v440 = vpop.permute.xlu0 %439
      %441 = vrot.lane.b32.xlu0 %v339, 8
      %v442 = vpop.permute.xlu0 %441
      %443 = vrot.lane.b32.xlu0 %v340, 8
      %v444 = vpop.permute.xlu0 %443
      %445 = vrot.lane.b32.xlu0 %v341, 8
      %v446 = vpop.permute.xlu0 %445
      %463 = vrot.lane.b32.xlu0 %v342, 12
      %v464 = vpop.permute.xlu0 %463
      %465 = vrot.lane.b32.xlu0 %v343, 12
      %v466 = vpop.permute.xlu0 %465
      %467 = vrot.lane.b32.xlu0 %v344, 12
      %v468 = vpop.permute.xlu0 %467
      %469 = vrot.lane.b32.xlu0 %v345, 12
      %v470 = vpop.permute.xlu0 %469
      %471 = vrot.lane.b32.xlu0 %v346, 12
      %v472 = vpop.permute.xlu0 %471
      %473 = vrot.lane.b32.xlu0 %v347, 12
      %v474 = vpop.permute.xlu0 %473
      %475 = vrot.lane.b32.xlu0 %v348, 12
      %v476 = vpop.permute.xlu0 %475
      %477 = vrot.lane.b32.xlu0 %v349, 12
      %v478 = vpop.permute.xlu0 %477
      %495 = vrot.lane.b32.xlu0 %v350, 16
      %v496 = vpop.permute.xlu0 %495
      %497 = vrot.lane.b32.xlu0 %v351, 16
      %v498 = vpop.permute.xlu0 %497
      %499 = vrot.lane.b32.xlu0 %v352, 16
      %v500 = vpop.permute.xlu0 %499
      %501 = vrot.lane.b32.xlu0 %v353, 16
      %v502 = vpop.permute.xlu0 %501
      %503 = vrot.lane.b32.xlu0 %v354, 16
      %v504 = vpop.permute.xlu0 %503
      %505 = vrot.lane.b32.xlu0 %v355, 16
      %v506 = vpop.permute.xlu0 %505
      %507 = vrot.lane.b32.xlu0 %v356, 16
      %v508 = vpop.permute.xlu0 %507
      %509 = vrot.lane.b32.xlu0 %v357, 16
      %v510 = vpop.permute.xlu0 %509
      %527 = vrot.lane.b32.xlu0 %v358, 20
      %v528 = vpop.permute.xlu0 %527
      %529 = vrot.lane.b32.xlu0 %v359, 20
      %v530 = vpop.permute.xlu0 %529
      %531 = vrot.lane.b32.xlu0 %v360, 20
      %v532 = vpop.permute.xlu0 %531
      %533 = vrot.lane.b32.xlu0 %v361, 20
      %v534 = vpop.permute.xlu0 %533
      %535 = vrot.lane.b32.xlu0 %v362, 20
      %v536 = vpop.permute.xlu0 %535
      %537 = vrot.lane.b32.xlu0 %v363, 20
      %v538 = vpop.permute.xlu0 %537
      %539 = vrot.lane.b32.xlu0 %v364, 20
      %v540 = vpop.permute.xlu0 %539
      %541 = vrot.lane.b32.xlu0 %v365, 20
      %v542 = vpop.permute.xlu0 %541
      %559 = vrot.lane.b32.xlu0 %v367, 24
      %v560 = vpop.permute.xlu0 %559
      %561 = vrot.lane.b32.xlu0 %v368, 24
      %v562 = vpop.permute.xlu0 %561
      %563 = vrot.lane.b32.xlu0 %v369, 24
      %v564 = vpop.permute.xlu0 %563
      %565 = vrot.lane.b32.xlu0 %v370, 24
      %v566 = vpop.permute.xlu0 %565
      %567 = vrot.lane.b32.xlu0 %v371, 24
      %v568 = vpop.permute.xlu0 %567
      %569 = vrot.lane.b32.xlu0 %v372, 24
      %v570 = vpop.permute.xlu0 %569
      %571 = vrot.lane.b32.xlu0 %v373, 24
      %v572 = vpop.permute.xlu0 %571
      %573 = vrot.lane.b32.xlu0 %v374, 24
      %v574 = vpop.permute.xlu0 %573
      %591 = vrot.lane.b32.xlu0 %v375, 28
      %v592 = vpop.permute.xlu0 %591
      %593 = vrot.lane.b32.xlu0 %v376, 28
      %v594 = vpop.permute.xlu0 %593
      %595 = vrot.lane.b32.xlu0 %v377, 28
      %v596 = vpop.permute.xlu0 %595
      %597 = vrot.lane.b32.xlu0 %v378, 28
      %v598 = vpop.permute.xlu0 %597
      %599 = vrot.lane.b32.xlu0 %v379, 28
      %v600 = vpop.permute.xlu0 %599
      %601 = vrot.lane.b32.xlu0 %v380, 28
      %v602 = vpop.permute.xlu0 %601
      %603 = vrot.lane.b32.xlu0 %v381, 28
      %v604 = vpop.permute.xlu0 %603
      %605 = vrot.lane.b32.xlu0 %v382, 28
      %v606 = vpop.permute.xlu0 %605
      %623 = vrot.lane.b32.xlu0 %v383, 32
      %v624 = vpop.permute.xlu0 %623
      %625 = vrot.lane.b32.xlu0 %v384, 32
      %v626 = vpop.permute.xlu0 %625
      %627 = vrot.lane.b32.xlu0 %v385, 32
      %v628 = vpop.permute.xlu0 %627
      %629 = vrot.lane.b32.xlu0 %v386, 32
      %v630 = vpop.permute.xlu0 %629
      %631 = vrot.lane.b32.xlu0 %v387, 32
      %v632 = vpop.permute.xlu0 %631
      %633 = vrot.lane.b32.xlu0 %v388, 32
      %v634 = vpop.permute.xlu0 %633
      %635 = vrot.lane.b32.xlu0 %v389, 32
      %v636 = vpop.permute.xlu0 %635
      %637 = vrot.lane.b32.xlu0 %v390, 32
      %v638 = vpop.permute.xlu0 %637
      %v647 = vsel %vm232, %v318, %v400
      %v648 = vsel %vm232, %v319, %v402
      %v649 = vsel %vm232, %v320, %v404
      %v650 = vsel %vm232, %v321, %v406
      %v651 = vsel %vm232, %v322, %v408
      %v652 = vsel %vm232, %v323, %v410
      %v653 = vsel %vm232, %v324, %v412
      %v654 = vsel %vm232, %v325, %v414
      %vm655 = vcmask 64512
      %v656 = vsel %vm655, %v647, %v432
      %v657 = vsel %vm655, %v648, %v434
      %v658 = vsel %vm655, %v649, %v436
      %v659 = vsel %vm655, %v650, %v438
      %v660 = vsel %vm655, %v651, %v440
      %v661 = vsel %vm655, %v652, %v442
      %v662 = vsel %vm655, %v653, %v444
      %v663 = vsel %vm655, %v654, %v446
      %vm664 = vcmask 97280
      %v665 = vsel %vm664, %v656, %v464
      %v666 = vsel %vm664, %v657, %v466
      %v667 = vsel %vm664, %v658, %v468
      %v668 = vsel %vm664, %v659, %v470
      %v669 = vsel %vm664, %v660, %v472
      %v670 = vsel %vm664, %v661, %v474
      %v671 = vsel %vm664, %v662, %v476
      %v672 = vsel %vm664, %v663, %v478
      %vm673 = vcmask 130048
      %v674 = vsel %vm673, %v665, %v496
      %v675 = vsel %vm673, %v666, %v498
      %v676 = vsel %vm673, %v667, %v500
      %v677 = vsel %vm673, %v668, %v502
      %v678 = vsel %vm673, %v669, %v504
      %v679 = vsel %vm673, %v670, %v506
      %v680 = vsel %vm673, %v671, %v508
      %v681 = vsel %vm673, %v672, %v510
      %vm682 = vcmask 162816
      %v683 = vsel %vm682, %v674, %v528
      %v684 = vsel %vm682, %v675, %v530
      %v685 = vsel %vm682, %v676, %v532
      %v686 = vsel %vm682, %v677, %v534
      %v687 = vsel %vm682, %v678, %v536
      %v688 = vsel %vm682, %v679, %v538
      %v689 = vsel %vm682, %v680, %v540
      %v690 = vsel %vm682, %v681, %v542
      %vm691 = vcmask 195584
      %v692 = vsel %vm691, %v683, %v560
      %v693 = vsel %vm691, %v684, %v562
      %v694 = vsel %vm691, %v685, %v564
      %v695 = vsel %vm691, %v686, %v566
      %v696 = vsel %vm691, %v687, %v568
      %v697 = vsel %vm691, %v688, %v570
      %v698 = vsel %vm691, %v689, %v572
      %v699 = vsel %vm691, %v690, %v574
      %vm700 = vcmask 228352
      %v701 = vsel %vm700, %v692, %v592
      %v702 = vsel %vm700, %v693, %v594
      %v703 = vsel %vm700, %v694, %v596
      %v704 = vsel %vm700, %v695, %v598
      %v705 = vsel %vm700, %v696, %v600
      %v706 = vsel %vm700, %v697, %v602
      %v707 = vsel %vm700, %v698, %v604
      %v708 = vsel %vm700, %v699, %v606
      %vm709 = vcmask 261120
      %v710 = vsel %vm709, %v701, %v624
      %v711 = vsel %vm709, %v702, %v626
      %v712 = vsel %vm709, %v703, %v628
      %v713 = vsel %vm709, %v704, %v630
      %v714 = vsel %vm709, %v705, %v632
      %v715 = vsel %vm709, %v706, %v634
      %v716 = vsel %vm709, %v707, %v636
      %v717 = vsel %vm709, %v708, %v638
      %v718 = vpack.c.bf16 %v711, %v710
      %v719 = vpack.c.bf16 %v713, %v712
      %v720 = vpack.c.bf16 %v715, %v714
      %v721 = vpack.c.bf16 %v717, %v716
      %v722 = vld [vmem:[%s1] sm:$0xf]
      %v723 = vld [vmem:[%s1 + $0x4] sm:$0xf]
      %v724 = vld [vmem:[%s1 + $0x8] sm:$0xf]
      %v725 = vld [vmem:[%s1 + $0xc] sm:$0xf]
      %v726 = vld [vmem:[%s1 + $0x10] sm:$0x3]
      %v732 = vunpack.c.l.b16 %v722
      %v733 = vunpack.c.l.b16 %v723
      %v734 = vunpack.c.l.b16 %v724
      %v735 = vunpack.c.l.b16 %v725
      %v736 = vunpack.c.l.b16 %v726
      %v737 = vpack.c.b16 %v733, %v732
      %v738 = vpack.c.b16 %v735, %v734
      %v739 = vpack.c.b16 %v736, %v736
      %vm742 = vcmask 293888
      %v744 = vsel %vm742, %v718, 0
      %v747 = vsel %vm742, %v719, 0
      %v750 = vsel %vm742, %v720, 0
      %v753 = vsel %vm742, %v721, 0
      %vm755 = vcmask 1041408
      %v757 = vsel %vm755, %v739, 0
      %759 = vmatpush.bf16.msra.mxu0 0
      %760 = vmatpush.bf16.msra.mxu0 0
      %761 = vmatpush.bf16.msra.mxu0 0
      %762 = vmatpush.bf16.msra.mxu0 0
      %763 = vmatpush.bf16.msra.mxu0 0
      %764 = vmatpush.bf16.msra.mxu0 %v757
      %765 = vmatpush.bf16.msra.mxu0 %v738
      %766 = vmatpush.bf16.msra.mxu0 %v737
      %767 = vmatmul.bf16.gmra.mxu0 %v744
      %v768 = vpop.f32.mrf.mxu0
      %v769 = vadd.f32 0.0, %v768
      %v770 = vpop.f32.mrf.mxu0
      %v771 = vadd.f32 0.0, %v770
      %772 = vmatmul.bf16.gmra.mxu0 %v747
      %v773 = vpop.f32.mrf.mxu0
      %v774 = vadd.f32 0.0, %v773
      %v775 = vpop.f32.mrf.mxu0
      %v776 = vadd.f32 0.0, %v775
      %777 = vmatmul.bf16.gmra.mxu0 %v750
      %v778 = vpop.f32.mrf.mxu0
      %v779 = vadd.f32 0.0, %v778
      %v780 = vpop.f32.mrf.mxu0
      %v781 = vadd.f32 0.0, %v780
      %782 = vmatmul.bf16.gmra.mxu0 %v753
      %v783 = vpop.f32.mrf.mxu0
      %v784 = vadd.f32 0.0, %v783
      %v785 = vpop.f32.mrf.mxu0
      %v786 = vadd.f32 0.0, %v785
      %787 = vdwg.mxu0
      %v788 = vsel %vm655, %v769, 0.0
      %v789 = vsel %vm655, %v771, 0.0
      %v790 = vadd.f32 %v788, %v789
      %v791 = vsel %vm655, %v774, 0.0
      %v792 = vadd.f32 %v790, %v791
      %v793 = vsel %vm655, %v776, 0.0
      %v794 = vadd.f32 %v792, %v793
      %v795 = vsel %vm655, %v779, 0.0
      %v796 = vadd.f32 %v794, %v795
      %v797 = vsel %vm655, %v781, 0.0
      %v798 = vadd.f32 %v796, %v797
      %v799 = vsel %vm655, %v784, 0.0
      %v800 = vadd.f32 %v798, %v799
      %v801 = vsel %vm655, %v786, 0.0
      %v802 = vadd.f32 %v800, %v801
      %v803 = vrot.slane %v802, 4
      %v804 = vadd.f32 %v802, %v803
      %v805 = vrot.slane %v804, 2
      %v806 = vadd.f32 %v804, %v805
      %v807 = vrot.slane %v806, 1
      %v808 = vadd.f32 %v806, %v807
      %vm809 = vcmask 57344
      %810 = vst.msk [vmem:[%s181] sm:$0x1] %vm809, %v808
      %v811 = vmul.f32 %v769, %v769
      %v812 = vmul.f32 %v771, %v771
      %v813 = vmul.f32 %v774, %v774
      %v814 = vmul.f32 %v776, %v776
      %v815 = vmul.f32 %v779, %v779
      %v816 = vmul.f32 %v781, %v781
      %v817 = vmul.f32 %v784, %v784
      %v818 = vmul.f32 %v786, %v786
      %v819 = vsel %vm655, %v811, 0.0
      %v820 = vsel %vm655, %v812, 0.0
      %v821 = vadd.f32 %v819, %v820
      %v822 = vsel %vm655, %v813, 0.0
      %v823 = vadd.f32 %v821, %v822
      %v824 = vsel %vm655, %v814, 0.0
      %v825 = vadd.f32 %v823, %v824
      %v826 = vsel %vm655, %v815, 0.0
      %v827 = vadd.f32 %v825, %v826
      %v828 = vsel %vm655, %v816, 0.0
      %v829 = vadd.f32 %v827, %v828
      %v830 = vsel %vm655, %v817, 0.0
      %v831 = vadd.f32 %v829, %v830
      %v832 = vsel %vm655, %v818, 0.0
      %v833 = vadd.f32 %v831, %v832
      %v834 = vrot.slane %v833, 4
      %v835 = vadd.f32 %v833, %v834
      %v836 = vrot.slane %v835, 2
      %v837 = vadd.f32 %v835, %v836
      %v838 = vrot.slane %v837, 1
      %v839 = vadd.f32 %v837, %v838
      %840 = vst.msk [vmem:[%s181 + $0x1] sm:$0x1] %vm809, %v839
      %v841 = vpack.c.bf16 %v769, %v769
      %v842 = vpack.c.bf16 %v771, %v771
      %v843 = vpack.c.bf16 %v774, %v774
      %v844 = vpack.c.bf16 %v776, %v776
      %v845 = vpack.c.bf16 %v779, %v779
      %v846 = vpack.c.bf16 %v781, %v781
      %v847 = vpack.c.bf16 %v784, %v784
      %v848 = vpack.c.bf16 %v786, %v786
      %vm849 = vcmask 60416
      %850 = vst.msk [vmem:[%s177] sm:$0xf] %vm849, %v841
      %851 = vst.msk [vmem:[%s177 + $0x4] sm:$0xf] %vm849, %v842
      %852 = vst.msk [vmem:[%s177 + $0x8] sm:$0xf] %vm849, %v843
      %853 = vst.msk [vmem:[%s177 + $0xc] sm:$0xf] %vm849, %v844
      %854 = vst.msk [vmem:[%s177 + $0x10] sm:$0xf] %vm849, %v845
      %855 = vst.msk [vmem:[%s177 + $0x14] sm:$0xf] %vm849, %v846
      %856 = vst.msk [vmem:[%s177 + $0x18] sm:$0xf] %vm849, %v847
      %857 = vst.msk [vmem:[%s177 + $0x1c] sm:$0xf] %vm849, %v848
      %p858 = scmp.lt.s32.totalorder %s15, 1
      %s859 = scalar_select %p858, %s15, 1
      %s860 = smul.addr %s859, 8
      %s861 = smul.addr %s860, 4
      %s862 = scalar_lea.vmem %s2, %s861
      %p863 = scmp.lt.s32.totalorder %s15, 1
      %s864 = scalar_select %p863, %s15, 1
      %s865 = smul.addr %s864, 2
      %s866 = scalar_lea.vmem %s3, %s865
      // Predicated region
      $region29: #{down_forward.3} parent=27 // pred_check
        %p867 = pneg %p80
      $region30: #{down_forward.3} parent=27 // pred_check_branch
        %869 = sbr.rel (%p867) target = $region32
      $region31: #{down_forward.3} parent=27 // pred_region
        _
      $region32: #{down_forward.3} parent=27 // pred_fallthru
        _
      // Predicated region
      $region33: #{down_forward.3} parent=27 // pred_check
        %p870 = pneg %p106
      $region34: #{down_forward.3} parent=27 // pred_check_branch
        %872 = sbr.rel (%p870) target = $region36
      $region35: #{down_forward.3} parent=27 // pred_region
        _
      $region36: #{down_forward.3} parent=27 // pred_fallthru
        _
    $region28: #{down_forward.3} parent=5 // pred_fallthru
      _
    %p873 = scmp.le.s32.totalorder 2, %s10
    // Predicated region
    $region37: #{down_forward.3} parent=5 // pred_check
      %p874 = pneg %p873
    $region38: #{down_forward.3} parent=5 // pred_check_branch
      %876 = sbr.rel (%p874) target = $region40
    $region39: #{down_forward.3} parent=5 // pred_region
      %s877 = ssub.s32 %s10, 2
      // Predicated region
      $region41: #{down_forward.3} parent=39 // pred_check
        %p878 = pneg %p86
      $region42: #{down_forward.3} parent=39 // pred_check_branch
        %880 = sbr.rel (%p878) target = $region44
      $region43: #{down_forward.3} parent=39 // pred_region
        %p881 = scmp.lt.s32.totalorder %s16, 1
        %s882 = scalar_select %p881, %s16, 1
        %s883 = smul.addr %s882, 8
        %s884 = smul.addr %s883, 4
        %s885 = scalar_lea.vmem %s2, %s884
      $region44: #{down_forward.3} parent=39 // pred_fallthru
        _
      // Predicated region
      $region45: #{down_forward.3} parent=39 // pred_check
        %p886 = pneg %p112
      $region46: #{down_forward.3} parent=39 // pred_check_branch
        %888 = sbr.rel (%p886) target = $region48
      $region47: #{down_forward.3} parent=39 // pred_region
        %p889 = scmp.lt.s32.totalorder %s16, 1
        %s890 = scalar_select %p889, %s16, 1
        %s891 = smul.addr %s890, 2
        %s892 = scalar_lea.vmem %s3, %s891
      $region48: #{down_forward.3} parent=39 // pred_fallthru
        _
    $region40: #{down_forward.3} parent=5 // pred_fallthru
      _
  $region6: #{down_forward.3} parent=0 // loop_footer
    %s14 = sadd.s32 1, %s10
  $region7: #{down_forward.3} parent=0 // loop_footer_branch
    %9 = sbr.rel target = $region3
  $region8: #{down_forward.3} parent=0 // loop_exit
    _

</llo_original>
